<compile_context>
chip_gen: v7x
topology: tpu7x:2x2x1
jax: 0.10.0
libtpu: 0.0.40
codegen_flags: <defaults>
</compile_context>

<pallas_src>
import functools

import jax
import jax.numpy as jnp
import numpy as np
from jax.experimental import pallas as pl
from jax.experimental.pallas import tpu as pltpu


# ----------------------------------------------------------------------------
# Pallas kernel (lane-dense, batch on lanes):
#   h_T  = relu(W1'^T @ x_T + b1'^T)        (H, blk)
#   mu_T = W2'^T @ h_T + b2'^T              (D_out, blk)
# ----------------------------------------------------------------------------
def _cdm_kernel(xT_ref, w1T_ref, b1T_ref, w2T_ref, b2T_ref, muT_ref):
    # (H, D_in) @ (D_in, blk) -> (H, blk); f32 MXU accumulation
    h = jnp.dot(w1T_ref[...], xT_ref[...], preferred_element_type=jnp.float32)
    # bias (H,1) broadcasts across the lane (batch) axis; relu on the VPU
    h = jnp.maximum(h + b1T_ref[...], 0.0)
    # (D_out, H) @ (H, blk) -> (D_out, blk); add folded output bias
    mu = jnp.dot(w2T_ref[...], h, preferred_element_type=jnp.float32)
    muT_ref[...] = (mu + b2T_ref[...]).astype(muT_ref.dtype)


# ----------------------------------------------------------------------------
# One-time folding of the rescale transforms into the MLP weights.
# (Module state X_mean/iLX/LY/... and the MLP weights are fixed across forward
# calls, so this is hoisted out of the hot path and cached by the caller.)
# ----------------------------------------------------------------------------
def fold_params(X_mean, iLX, w1, b1, w2, b2, Y_mean, LY, iLY, temperature=1.0):
    xoff = X_mean @ iLX                                  # (1, D_in)
    W1f = iLX @ w1                                       # (D_in, H)
    b1f = b1 - xoff @ w1                                 # (1, H)
    locY = (Y_mean @ iLY) @ LY                           # (1, D_out)
    W2f = w2 @ LY                                        # (H, D_out)
    b2f = b2 @ LY + locY                                 # (1, D_out)
    # sqrtSigma is batch-invariant: (ones*T) @ LY == T * sum(LY, axis=0)
    sqrtSigma_row = temperature * jnp.sum(LY, axis=0, keepdims=True)
    return dict(
        w1T=jnp.asarray(W1f.T, jnp.float32),             # (H, D_in)
        b1T=jnp.asarray(b1f.T, jnp.float32),             # (H, 1)
        w2T=jnp.asarray(W2f.T, jnp.float32),             # (D_out, H)
        b2T=jnp.asarray(b2f.T, jnp.float32),             # (D_out, 1)
        sqrtSigma_row=jnp.asarray(sqrtSigma_row, jnp.float32),  # (1, D_out)
    )


def _default_num_blocks():
    """2 parallel blocks on v7x (2 TensorCores/chip); 1 block otherwise."""
    try:
        kind = jax.devices()[0].device_kind.lower()
        if "v7" in kind:
            return 2
    except Exception:
        pass
    return 1


@functools.partial(jax.jit, static_argnames=("num_blocks",))
def _mu_forward(x, w1T, b1T, w2T, b2T, *, num_blocks):
    N, D_in = x.shape
    H = w1T.shape[0]
    D_out = w2T.shape[0]
    blk = N // num_blocks

    # Lane-dense presentation: batch on the 128-lane axis (wrapper transpose
    # of a ~128 KiB array is cheap relative to masked 16/128-lane accesses).
    xT = jnp.transpose(x.astype(jnp.float32))            # (D_in, N)

    muT = pl.pallas_call(
        _cdm_kernel,
        out_shape=jax.ShapeDtypeStruct((D_out, N), jnp.float32),
        grid_spec=pltpu.PrefetchScalarGridSpec(
            num_scalar_prefetch=0,
            grid=(num_blocks,),
            in_specs=[
                pl.BlockSpec((D_in, blk), lambda i: (0, i)),   # x^T (batch tiled)
                pl.BlockSpec((H, D_in), lambda i: (0, 0)),     # W1'^T
                pl.BlockSpec((H, 1), lambda i: (0, 0)),        # b1'^T
                pl.BlockSpec((D_out, H), lambda i: (0, 0)),    # W2'^T
                pl.BlockSpec((D_out, 1), lambda i: (0, 0)),    # b2'^T
            ],
            out_specs=pl.BlockSpec((D_out, blk), lambda i: (0, i)),
        ),
        compiler_params=pltpu.CompilerParams(
            dimension_semantics=("parallel",)),
        # VMEM note: even blk=N=2048 in f32 double-buffered is < 0.5 MiB —
        # far below every chip's scoped VMEM limit; no vmem tuning needed.
    )(xT, w1T, b1T, w2T, b2T)

    return jnp.transpose(muT)                            # (N, D_out)


def conditional_density_forward(x, folded, num_blocks=None):
    """Forward of ConditionalDensityModel with folded/cached parameters.

    Returns (mu, sqrtSigma_row):
      mu:            (N, D_out)
      sqrtSigma_row: (1, D_out) — batch-invariant; broadcast by the consumer
                     if a dense (N, D_out) array is truly required.
    """
    N = x.shape[0]
    if num_blocks is None:
        num_blocks = _default_num_blocks()
    # Multi-block needs 128-lane-aligned blocks that evenly divide N;
    # otherwise fall back to a single full-array block (no padding, no extra
    # HBM round trip of x).
    if num_blocks > 1 and (N % (num_blocks * 128) != 0):
        num_blocks = 1
    mu = _mu_forward(x, folded["w1T"], folded["b1T"], folded["w2T"],
                     folded["b2T"], num_blocks=int(num_blocks))
    return mu, folded["sqrtSigma_row"]


# ----------------------------------------------------------------------------
# Glue: scaling setup (set_input_scaling / set_output_scaling) in plain JAX
# ----------------------------------------------------------------------------
def make_scaling(data):
    """Mirrors set_{input,output}_scaling: returns (mean, L, iL)."""
    mean = jnp.mean(data, axis=0, keepdims=True)
    std = jnp.std(data, axis=0, ddof=1)                  # torch std is unbiased
    delta = data - mean + 1e-4 * std
    cov = delta.T @ delta / (data.shape[0] - 1)
    L = 2.0 * jnp.linalg.cholesky(cov)
    iL = jnp.linalg.inv(L)
    return mean, L, iL


def reference_forward(x, X_mean, iLX, w1, b1, w2, b2, Y_mean, LY, iLY,
                      temperature=1.0):
    """Pure-JAX reference matching the torch forward semantics (unfolded)."""
    xr = (x - X_mean) @ iLX
    h = jnp.maximum(xr @ w1 + b1, 0.0)
    params = h @ w2 + b2
    mu = params @ LY + ((Y_mean @ iLY) @ LY)
    sqrtSigma = (jnp.ones_like(params) * temperature) @ LY
    return mu, sqrtSigma


# ----------------------------------------------------------------------------
if __name__ == "__main__":
    key = jax.random.PRNGKey(0)
    kX, kY, kx, kw1, kb1, kw2, kb2, kx2 = jax.random.split(key, 8)

    N, D_in, H, D_out = 2048, 16, 32, 8
    temperature = 1.0

    # deterministic "training data" used only to build the scaling transforms
    X_data = jax.random.normal(kX, (256, D_in), dtype=jnp.float32) * 2.0 + 0.5
    Y_data = jax.random.normal(kY, (256, D_out), dtype=jnp.float32) * 3.0 - 1.0
    X_mean, LX, iLX = make_scaling(X_data)
    Y_mean, LY, iLY = make_scaling(Y_data)

    # deterministic base-model (MLP) parameters
    w1 = jax.random.normal(kw1, (D_in, H), dtype=jnp.float32) * (1.0 / np.sqrt(D_in))
    b1 = jax.random.normal(kb1, (1, H), dtype=jnp.float32) * 0.01
    w2 = jax.random.normal(kw2, (H, D_out), dtype=jnp.float32) * (1.0 / np.sqrt(H))
    b2 = jax.random.normal(kb2, (1, D_out), dtype=jnp.float32) * 0.01

    # fold the rescale transforms into the weights ONCE (cached module state)
    folded = fold_params(X_mean, iLX, w1, b1, w2, b2, Y_mean, LY, iLY,
                         temperature=temperature)
    folded = {k: jax.block_until_ready(v) for k, v in folded.items()}

    # forward input
    x = jax.random.normal(kx, (N, D_in), dtype=jnp.float32)

    mu_ref, sig_ref = reference_forward(
        x, X_mean, iLX, w1, b1, w2, b2, Y_mean, LY, iLY,
        temperature=temperature)

    # ---- default path: 1 grid step on v5e/v6e, 2 parallel blocks on v7x
    mu, sig_row = conditional_density_forward(x, folded)
    jax.block_until_ready((mu, sig_row))
    np.testing.assert_allclose(np.asarray(mu), np.asarray(mu_ref),
                               rtol=1e-4, atol=1e-4)
    np.testing.assert_allclose(
        np.broadcast_to(np.asarray(sig_row), (N, D_out)),
        np.asarray(sig_ref), rtol=1e-4, atol=1e-4)

    # ---- explicit 2-block path (v7x megacore sharding); also correct on 1-TC
    mu2, _ = conditional_density_forward(x, folded, num_blocks=2)
    jax.block_until_ready(mu2)
    np.testing.assert_allclose(np.asarray(mu2), np.asarray(mu_ref),
                               rtol=1e-4, atol=1e-4)

    # ---- ragged batch (not a multiple of 128): single full-array block,
    #      no wrapper-side padding of x
    N2 = 1000
    x2 = jax.random.normal(kx2, (N2, D_in), dtype=jnp.float32)
    mu_ref2, _ = reference_forward(
        x2, X_mean, iLX, w1, b1, w2, b2, Y_mean, LY, iLY,
        temperature=temperature)
    mu3, _ = conditional_density_forward(x2, folded)
    jax.block_until_ready(mu3)
    np.testing.assert_allclose(np.asarray(mu3), np.asarray(mu_ref2),
                               rtol=1e-4, atol=1e-4)

    print("KERNEL_OK")
</pallas_src>

<mosaic_0001>
module attributes {stable_mosaic.version = 11 : i64} {
  func.func @_cdm_kernel(%arg0: i32, %arg1: memref<16x2048xf32, #tpu.memory_space<vmem>>, %arg2: memref<32x16xf32, #tpu.memory_space<vmem>>, %arg3: memref<32x1xf32, #tpu.memory_space<vmem>>, %arg4: memref<8x32xf32, #tpu.memory_space<vmem>>, %arg5: memref<8x1xf32, #tpu.memory_space<vmem>>, %arg6: memref<8x2048xf32, #tpu.memory_space<vmem>>) attributes {dimension_semantics = [#tpu.dimension_semantics<parallel>], iteration_bounds = array<i64: 1>, scalar_prefetch = 0 : i64, scratch_operands = 0 : i64, tpu.core_type = #tpu.core_type<tc>, window_params = [{transform_indices = @transform_0, window_bounds = array<i64: 16, 2048>}, {pipeline_mode = #tpu.pipeline_mode<synchronous>, transform_indices = @transform_1, window_bounds = array<i64: 32, 16>}, {pipeline_mode = #tpu.pipeline_mode<synchronous>, transform_indices = @transform_2, window_bounds = array<i64: 32, 1>}, {pipeline_mode = #tpu.pipeline_mode<synchronous>, transform_indices = @transform_3, window_bounds = array<i64: 8, 32>}, {pipeline_mode = #tpu.pipeline_mode<synchronous>, transform_indices = @transform_4, window_bounds = array<i64: 8, 1>}, {transform_indices = @transform_5, window_bounds = array<i64: 8, 2048>}]} {
    %c0 = arith.constant 0 : index
    %c0_0 = arith.constant 0 : index
    %0 = vector.load %arg2[%c0, %c0_0] : memref<32x16xf32, #tpu.memory_space<vmem>>, vector<32x16xf32>
    %c0_1 = arith.constant 0 : index
    %c0_2 = arith.constant 0 : index
    %1 = vector.load %arg1[%c0_1, %c0_2] : memref<16x2048xf32, #tpu.memory_space<vmem>>, vector<16x2048xf32>
    %cst = arith.constant dense<0.000000e+00> : vector<32x2048xf32>
    %2 = tpu.matmul %0, %1, %cst {dimension_numbers = #tpu.dot_dimension_numbers<[1], [0], [0], [1], [0, 0, 1, 1], [], []>} : vector<32x16xf32>, vector<16x2048xf32>, vector<32x2048xf32> -> vector<32x2048xf32>
    %c0_3 = arith.constant 0 : index
    %c0_4 = arith.constant 0 : index
    %3 = vector.load %arg3[%c0_3, %c0_4] : memref<32x1xf32, #tpu.memory_space<vmem>>, vector<32x1xf32>
    %4 = vector.broadcast %3 : vector<32x1xf32> to vector<32x2048xf32>
    %5 = arith.addf %2, %4 : vector<32x2048xf32>
    %cst_5 = arith.constant 0.000000e+00 : f32
    %6 = vector.broadcast %cst_5 : f32 to vector<32x2048xf32>
    %7 = arith.maximumf %5, %6 : vector<32x2048xf32>
    %c0_6 = arith.constant 0 : index
    %c0_7 = arith.constant 0 : index
    %8 = vector.load %arg4[%c0_6, %c0_7] : memref<8x32xf32, #tpu.memory_space<vmem>>, vector<8x32xf32>
    %cst_8 = arith.constant dense<0.000000e+00> : vector<8x2048xf32>
    %9 = tpu.matmul %8, %7, %cst_8 {dimension_numbers = #tpu.dot_dimension_numbers<[1], [0], [0], [1], [0, 0, 1, 1], [], []>} : vector<8x32xf32>, vector<32x2048xf32>, vector<8x2048xf32> -> vector<8x2048xf32>
    %c0_9 = arith.constant 0 : index
    %c0_10 = arith.constant 0 : index
    %10 = vector.load %arg5[%c0_9, %c0_10] : memref<8x1xf32, #tpu.memory_space<vmem>>, vector<8x1xf32>
    %11 = vector.broadcast %10 : vector<8x1xf32> to vector<8x2048xf32>
    %12 = arith.addf %9, %11 : vector<8x2048xf32>
    %c0_11 = arith.constant 0 : index
    %c0_12 = arith.constant 0 : index
    %13 = vector.load %arg6[%c0_11, %c0_12] : memref<8x2048xf32, #tpu.memory_space<vmem>>, vector<8x2048xf32>
    tpu.vector_store %arg6[%c0_11, %c0_12], %12 {strides = array<i32>} : memref<8x2048xf32, #tpu.memory_space<vmem>>, vector<8x2048xf32>,
    return
  }
  func.func @transform_0(%arg0: i32) -> (i32, i32) {
    %c0_i32 = arith.constant 0 : i32
    %c0_i32_0 = arith.constant 0 : i32
    return %c0_i32, %arg0 : i32, i32
  }
  func.func @transform_1(%arg0: i32) -> (i32, i32) {
    %c0_i32 = arith.constant 0 : i32
    %c0_i32_0 = arith.constant 0 : i32
    %c0_i32_1 = arith.constant 0 : i32
    return %c0_i32, %c0_i32_0 : i32, i32
  }
  func.func @transform_2(%arg0: i32) -> (i32, i32) {
    %c0_i32 = arith.constant 0 : i32
    %c0_i32_0 = arith.constant 0 : i32
    %c0_i32_1 = arith.constant 0 : i32
    return %c0_i32, %c0_i32_0 : i32, i32
  }
  func.func @transform_3(%arg0: i32) -> (i32, i32) {
    %c0_i32 = arith.constant 0 : i32
    %c0_i32_0 = arith.constant 0 : i32
    %c0_i32_1 = arith.constant 0 : i32
    return %c0_i32, %c0_i32_0 : i32, i32
  }
  func.func @transform_4(%arg0: i32) -> (i32, i32) {
    %c0_i32 = arith.constant 0 : i32
    %c0_i32_0 = arith.constant 0 : i32
    %c0_i32_1 = arith.constant 0 : i32
    return %c0_i32, %c0_i32_0 : i32, i32
  }
  func.func @transform_5(%arg0: i32) -> (i32, i32) {
    %c0_i32 = arith.constant 0 : i32
    %c0_i32_0 = arith.constant 0 : i32
    return %c0_i32, %arg0 : i32, i32
  }
}

</mosaic_0001>

<llo_original>
// kernel: _mu_forward.1
$region0: #{_mu_forward.1}
  #allocation0 [shape = 'u32[]', space=smem, size = 0x4, offset = 0x4, fixed_abs, tag = 'smem constant byte address 0x4 - core index']
  #allocation1 [shape = 'u32[144,128]{1,0:T(1,128)}', space=vmem, size = 0x12000, scoped, tag = 'internal scratch']
  %s0 = inlined_call_operand.hbm [shape: f32[16,2048], index: 0, kind: input, shape index: {}]
  %s1 = inlined_call_operand.vmem [shape: f32[32,16], index: 1, kind: input, shape index: {}]
  %s2 = inlined_call_operand.vmem [shape: f32[32,1], index: 2, kind: input, shape index: {}]
  %s3 = inlined_call_operand.vmem [shape: f32[8,32], index: 3, kind: input, shape index: {}]
  %s4 = inlined_call_operand.vmem [shape: f32[8,1], index: 4, kind: input, shape index: {}]
  %s5 = inlined_call_operand.hbm [shape: f32[8,2048], index: 5, kind: output, shape index: {}]
  %s6 = sld [smem:[#allocation0]]
  $region34: #{_mu_forward.1} parent=0
    _
  %s8 = ssub.s32 1, %s6
  %s9 = scalar_select 0, %s8, %s6
  $region1: #{_mu_forward.1} parent=0
    #allocation2 [shape = 'u8[131072]{0}', space=vmem, size = 0x20000, scoped, tag = 'input window, operand 0, single buffered']
    #allocation3 [shape = 's32[1]{0}', space=sflag, size = 0x4, scoped, tag = 'scoped memory for _mu_forward.1']
    #allocation4 [shape = 's32[1]{0}', space=sflag, size = 0x4, scoped, tag = 'scoped memory for _mu_forward.1']
    #allocation5 [shape = 'u8[65536]{0}', space=vmem, size = 0x10000, scoped, tag = 'output window, operand 0, single buffered']
    %10 = vsyncpa [#allocation3], 0
    %11 = vsyncpa [#allocation4], 0
    // Predicated region
    $region2: #{_mu_forward.1} parent=1 // pred_check
      _
    $region3: #{_mu_forward.1} parent=1 // pred_check_branch
      %13 = sbr.rel (0) target = $region5
    $region4: #{_mu_forward.1} parent=1 // pred_region
      %s15 = ssub.s32 4096, 4096
      %16 = vsyncadd [#allocation3], %s15
      %s17 = sshll.u32 [#allocation2], 4
      %s18 = int_to_ptr.vmem [resolvable:$true] %s17
      %23 = dma.hbm_to_vmem [thread:$0]  %s0, 4096, %s18, [#allocation3], 2048, 2048, 128
    $region5: #{_mu_forward.1} parent=1 // pred_fallthru
      _
    // Predicated region
    $region6: #{_mu_forward.1} parent=1 // pred_check
      _
    $region7: #{_mu_forward.1} parent=1 // pred_check_branch
      %25 = sbr.rel (0) target = $region9
    $region8: #{_mu_forward.1} parent=1 // pred_region
      _
    $region9: #{_mu_forward.1} parent=1 // pred_fallthru
      _
    // Predicated region
    $region10: #{_mu_forward.1} parent=1 // pred_check
      _
    $region11: #{_mu_forward.1} parent=1 // pred_check_branch
      %27 = sbr.rel (0) target = $region13
    $region12: #{_mu_forward.1} parent=1 // pred_region
      _
    $region13: #{_mu_forward.1} parent=1 // pred_fallthru
      _
    // Predicated region
    $region14: #{_mu_forward.1} parent=1 // pred_check
      _
    $region15: #{_mu_forward.1} parent=1 // pred_check_branch
      %29 = sbr.rel (0) target = $region17
    $region16: #{_mu_forward.1} parent=1 // pred_region
      _
    $region17: #{_mu_forward.1} parent=1 // pred_fallthru
      _
    // Predicated region
    $region18: #{_mu_forward.1} parent=1 // pred_check
      _
    $region19: #{_mu_forward.1} parent=1 // pred_check_branch
      %31 = sbr.rel (0) target = $region21
    $region20: #{_mu_forward.1} parent=1 // pred_region
      _
    $region21: #{_mu_forward.1} parent=1 // pred_fallthru
      _
    // Predicated region
    $region22: #{_mu_forward.1} parent=1 // pred_check
      _
    $region23: #{_mu_forward.1} parent=1 // pred_check_branch
      %33 = sbr.rel (0) target = $region25
    $region24: #{_mu_forward.1} parent=1 // pred_region
      %34 = dma.done [#allocation3], 4096
    $region25: #{_mu_forward.1} parent=1 // pred_fallthru
      _
    %v35 = vld [vmem:[%s1] sm:$0xff]
    %v36 = vld [vmem:[%s1 + $0x8] sm:$0xff]
    %v37 = vld [vmem:[%s1 + $0x10] sm:$0xff]
    %v38 = vld [vmem:[%s1 + $0x18] sm:$0xff]
    %v39 = vld [vmem:[#allocation2] sm:$0xff]
    %v40 = vld [vmem:[#allocation2 + $0x8] sm:$0xff]
    %v41 = vld [vmem:[#allocation2 + $0x10] sm:$0xff]
    %v42 = vld [vmem:[#allocation2 + $0x18] sm:$0xff]
    %v43 = vld [vmem:[#allocation2 + $0x20] sm:$0xff]
    %v44 = vld [vmem:[#allocation2 + $0x28] sm:$0xff]
    %v45 = vld [vmem:[#allocation2 + $0x30] sm:$0xff]
    %v46 = vld [vmem:[#allocation2 + $0x38] sm:$0xff]
    %v47 = vld [vmem:[#allocation2 + $0x40] sm:$0xff]
    %v48 = vld [vmem:[#allocation2 + $0x48] sm:$0xff]
    %v49 = vld [vmem:[#allocation2 + $0x50] sm:$0xff]
    %v50 = vld [vmem:[#allocation2 + $0x58] sm:$0xff]
    %v51 = vld [vmem:[#allocation2 + $0x60] sm:$0xff]
    %v52 = vld [vmem:[#allocation2 + $0x68] sm:$0xff]
    %v53 = vld [vmem:[#allocation2 + $0x70] sm:$0xff]
    %v54 = vld [vmem:[#allocation2 + $0x78] sm:$0xff]
    %v55 = vld [vmem:[#allocation2 + $0x80] sm:$0xff]
    %v56 = vld [vmem:[#allocation2 + $0x88] sm:$0xff]
    %v57 = vld [vmem:[#allocation2 + $0x90] sm:$0xff]
    %v58 = vld [vmem:[#allocation2 + $0x98] sm:$0xff]
    %v59 = vld [vmem:[#allocation2 + $0xa0] sm:$0xff]
    %v60 = vld [vmem:[#allocation2 + $0xa8] sm:$0xff]
    %v61 = vld [vmem:[#allocation2 + $0xb0] sm:$0xff]
    %v62 = vld [vmem:[#allocation2 + $0xb8] sm:$0xff]
    %v63 = vld [vmem:[#allocation2 + $0xc0] sm:$0xff]
    %v64 = vld [vmem:[#allocation2 + $0xc8] sm:$0xff]
    %v65 = vld [vmem:[#allocation2 + $0xd0] sm:$0xff]
    %v66 = vld [vmem:[#allocation2 + $0xd8] sm:$0xff]
    %v67 = vld [vmem:[#allocation2 + $0xe0] sm:$0xff]
    %v68 = vld [vmem:[#allocation2 + $0xe8] sm:$0xff]
    %v69 = vld [vmem:[#allocation2 + $0xf0] sm:$0xff]
    %v70 = vld [vmem:[#allocation2 + $0xf8] sm:$0xff]
    %v71 = vld [vmem:[%s2] sm:$0xff]
    %v72 = vld [vmem:[%s2 + $0x8] sm:$0xff]
    %v73 = vld [vmem:[%s2 + $0x10] sm:$0xff]
    %v74 = vld [vmem:[%s2 + $0x18] sm:$0xff]
    %76 = vset.pattern.permute.xlu0 0
    %77 = vperm.xlu0 %76, %v71
    %v78 = vpop.permute.xlu0 %77
    %81 = vset.pattern.permute.xlu0 0
    %82 = vperm.xlu0 %81, %v72
    %v83 = vpop.permute.xlu0 %82
    %86 = vset.pattern.permute.xlu0 0
    %87 = vperm.xlu0 %86, %v73
    %v88 = vpop.permute.xlu0 %87
    %91 = vset.pattern.permute.xlu0 0
    %92 = vperm.xlu0 %91, %v74
    %v93 = vpop.permute.xlu0 %92
    %vm95 = vcmask 130048
    %v97 = vsel %vm95, %v35, 0
    %v100 = vsel %vm95, %v36, 0
    %v103 = vsel %vm95, %v37, 0
    %v106 = vsel %vm95, %v38, 0
    %108 = vmatprep.subr.mxu0 %v40
    %109 = vmatpush1.msra.mxu0 %v39
    %110 = vmatprep.subr.mxu0 %v56
    %111 = vmatpush1.msra.mxu0 %v55
    %112 = vmatprep.subr.mxu0 0.0
    %113 = vmatpush1.msra.mxu0 0.0
    %114 = vmatprep.subr.mxu0 0.0
    %115 = vmatpush1.msra.mxu0 0.0
    %116 = vmatprep.subr.mxu0 0.0
    %117 = vmatpush1.msra.mxu0 0.0
    %118 = vmatprep.subr.mxu0 0.0
    %119 = vmatpush1.msra.mxu0 0.0
    %120 = vmatprep.subr.mxu0 0.0
    %121 = vmatpush1.msra.mxu0 0.0
    %122 = vmatprep.subr.mxu0 0.0
    %123 = vmatpush1.msra.mxu0 0.0
    %124 = vmatprep.subr.mxu0 0.0
    %125 = vmatpush1.msra.mxu0 0.0
    %126 = vmatprep.subr.mxu0 0.0
    %127 = vmatpush1.msra.mxu0 0.0
    %128 = vmatprep.subr.mxu0 0.0
    %129 = vmatpush1.msra.mxu0 0.0
    %130 = vmatprep.subr.mxu0 0.0
    %131 = vmatpush1.msra.mxu0 0.0
    %132 = vmatprep.subr.mxu0 0.0
    %133 = vmatpush1.msra.mxu0 0.0
    %134 = vmatprep.subr.mxu0 0.0
    %135 = vmatpush1.msra.mxu0 0.0
    %136 = vmatprep.subr.mxu0 0.0
    %137 = vmatpush1.msra.mxu0 0.0
    %138 = vmatprep.subr.mxu0 0.0
    %139 = vmatpush1.msra.mxu0 0.0
    %140 = vmatprep.subr.mxu0 0.0
    %141 = vmatpush1.msra.mxu0 0.0
    %142 = vmatprep.subr.mxu0 0.0
    %143 = vmatpush1.msra.mxu0 0.0
    %144 = vmatprep.subr.mxu0 0.0
    %145 = vmatpush1.msra.mxu0 0.0
    %146 = vmatprep.subr.mxu0 0.0
    %147 = vmatpush1.msra.mxu0 0.0
    %148 = vmatprep.subr.mxu0 0.0
    %149 = vmatpush1.msra.mxu0 0.0
    %150 = vmatprep.subr.mxu0 0.0
    %151 = vmatpush1.msra.mxu0 0.0
    %152 = vmatprep.subr.mxu0 0.0
    %153 = vmatpush1.msra.mxu0 0.0
    %154 = vmatprep.subr.mxu0 0.0
    %155 = vmatpush1.msra.mxu0 0.0
    %156 = vmatprep.subr.mxu0 0.0
    %157 = vmatpush1.msra.mxu0 0.0
    %158 = vmatprep.subr.mxu0 0.0
    %159 = vmatpush1.msra.mxu0 0.0
    %160 = vmatprep.subr.mxu0 0.0
    %161 = vmatpush1.msra.mxu0 0.0
    %162 = vmatprep.subr.mxu0 0.0
    %163 = vmatpush1.msra.mxu0 0.0
    %164 = vmatprep.subr.mxu0 0.0
    %165 = vmatpush1.msra.mxu0 0.0
    %166 = vmatprep.subr.mxu0 0.0
    %167 = vmatpush1.msra.mxu0 0.0
    %168 = vmatprep.subr.mxu0 0.0
    %169 = vmatpush1.msra.mxu0 0.0
    %170 = vmatprep.subr.mxu0 0.0
    %171 = vmatpush1.msra.mxu0 0.0
    %172 = vmatprep.mubr.f32.mxu0 0.0
    %173 = vmatmul.mubr.f32.gmra.mrb[0].mxu0 %v97
    %v174 = vpop.f32.mrb[0].mxu0
    %v175 = vadd.f32 %v78, %v174
    %v176 = vpop.f32.mrb[0].mxu0
    %v177 = vadd.f32 %v78, %v176
    %178 = vmatprep.mubr.f32.mxu0 0.0
    %179 = vmatmul.mubr.f32.gmra.mrb[0].mxu0 %v100
    %v180 = vpop.f32.mrb[0].mxu0
    %v181 = vadd.f32 %v83, %v180
    %v182 = vpop.f32.mrb[0].mxu0
    %v183 = vadd.f32 %v83, %v182
    %184 = vmatprep.mubr.f32.mxu0 0.0
    %185 = vmatmul.mubr.f32.gmra.mrb[0].mxu0 %v103
    %v186 = vpop.f32.mrb[0].mxu0
    %v187 = vadd.f32 %v88, %v186
    %v188 = vpop.f32.mrb[0].mxu0
    %v189 = vadd.f32 %v88, %v188
    %190 = vmatprep.mubr.f32.mxu0 0.0
    %191 = vmatmul.mubr.f32.gmra.mrb[0].mxu0 %v106
    %v192 = vpop.f32.mrb[0].mxu0
    %v193 = vadd.f32 %v93, %v192
    %v194 = vpop.f32.mrb[0].mxu0
    %v195 = vadd.f32 %v93, %v194
    %196 = vdwg.mxu0
    %197 = vmatprep.subr.mxu0 %v42
    %198 = vmatpush1.msra.mxu0 %v41
    %199 = vmatprep.subr.mxu0 %v58
    %200 = vmatpush1.msra.mxu0 %v57
    %201 = vmatprep.subr.mxu0 0.0
    %202 = vmatpush1.msra.mxu0 0.0
    %203 = vmatprep.subr.mxu0 0.0
    %204 = vmatpush1.msra.mxu0 0.0
    %205 = vmatprep.subr.mxu0 0.0
    %206 = vmatpush1.msra.mxu0 0.0
    %207 = vmatprep.subr.mxu0 0.0
    %208 = vmatpush1.msra.mxu0 0.0
    %209 = vmatprep.subr.mxu0 0.0
    %210 = vmatpush1.msra.mxu0 0.0
    %211 = vmatprep.subr.mxu0 0.0
    %212 = vmatpush1.msra.mxu0 0.0
    %213 = vmatprep.subr.mxu0 0.0
    %214 = vmatpush1.msra.mxu0 0.0
    %215 = vmatprep.subr.mxu0 0.0
    %216 = vmatpush1.msra.mxu0 0.0
    %217 = vmatprep.subr.mxu0 0.0
    %218 = vmatpush1.msra.mxu0 0.0
    %219 = vmatprep.subr.mxu0 0.0
    %220 = vmatpush1.msra.mxu0 0.0
    %221 = vmatprep.subr.mxu0 0.0
    %222 = vmatpush1.msra.mxu0 0.0
    %223 = vmatprep.subr.mxu0 0.0
    %224 = vmatpush1.msra.mxu0 0.0
    %225 = vmatprep.subr.mxu0 0.0
    %226 = vmatpush1.msra.mxu0 0.0
    %227 = vmatprep.subr.mxu0 0.0
    %228 = vmatpush1.msra.mxu0 0.0
    %229 = vmatprep.subr.mxu0 0.0
    %230 = vmatpush1.msra.mxu0 0.0
    %231 = vmatprep.subr.mxu0 0.0
    %232 = vmatpush1.msra.mxu0 0.0
    %233 = vmatprep.subr.mxu0 0.0
    %234 = vmatpush1.msra.mxu0 0.0
    %235 = vmatprep.subr.mxu0 0.0
    %236 = vmatpush1.msra.mxu0 0.0
    %237 = vmatprep.subr.mxu0 0.0
    %238 = vmatpush1.msra.mxu0 0.0
    %239 = vmatprep.subr.mxu0 0.0
    %240 = vmatpush1.msra.mxu0 0.0
    %241 = vmatprep.subr.mxu0 0.0
    %242 = vmatpush1.msra.mxu0 0.0
    %243 = vmatprep.subr.mxu0 0.0
    %244 = vmatpush1.msra.mxu0 0.0
    %245 = vmatprep.subr.mxu0 0.0
    %246 = vmatpush1.msra.mxu0 0.0
    %247 = vmatprep.subr.mxu0 0.0
    %248 = vmatpush1.msra.mxu0 0.0
    %249 = vmatprep.subr.mxu0 0.0
    %250 = vmatpush1.msra.mxu0 0.0
    %251 = vmatprep.subr.mxu0 0.0
    %252 = vmatpush1.msra.mxu0 0.0
    %253 = vmatprep.subr.mxu0 0.0
    %254 = vmatpush1.msra.mxu0 0.0
    %255 = vmatprep.subr.mxu0 0.0
    %256 = vmatpush1.msra.mxu0 0.0
    %257 = vmatprep.subr.mxu0 0.0
    %258 = vmatpush1.msra.mxu0 0.0
    %259 = vmatprep.subr.mxu0 0.0
    %260 = vmatpush1.msra.mxu0 0.0
    %261 = vmatprep.mubr.f32.mxu0 0.0
    %262 = vmatmul.mubr.f32.gmra.mrb[0].mxu0 %v97
    %v263 = vpop.f32.mrb[0].mxu0
    %v264 = vadd.f32 %v78, %v263
    %v265 = vpop.f32.mrb[0].mxu0
    %v266 = vadd.f32 %v78, %v265
    %267 = vmatprep.mubr.f32.mxu0 0.0
    %268 = vmatmul.mubr.f32.gmra.mrb[0].mxu0 %v100
    %v269 = vpop.f32.mrb[0].mxu0
    %v270 = vadd.f32 %v83, %v269
    %v271 = vpop.f32.mrb[0].mxu0
    %v272 = vadd.f32 %v83, %v271
    %273 = vmatprep.mubr.f32.mxu0 0.0
    %274 = vmatmul.mubr.f32.gmra.mrb[0].mxu0 %v103
    %v275 = vpop.f32.mrb[0].mxu0
    %v276 = vadd.f32 %v88, %v275
    %v277 = vpop.f32.mrb[0].mxu0
    %v278 = vadd.f32 %v88, %v277
    %279 = vmatprep.mubr.f32.mxu0 0.0
    %280 = vmatmul.mubr.f32.gmra.mrb[0].mxu0 %v106
    %v281 = vpop.f32.mrb[0].mxu0
    %v282 = vadd.f32 %v93, %v281
    %v283 = vpop.f32.mrb[0].mxu0
    %v284 = vadd.f32 %v93, %v283
    %285 = vdwg.mxu0
    %286 = vmatprep.subr.mxu0 %v44
    %287 = vmatpush1.msra.mxu0 %v43
    %288 = vmatprep.subr.mxu0 %v60
    %289 = vmatpush1.msra.mxu0 %v59
    %290 = vmatprep.subr.mxu0 0.0
    %291 = vmatpush1.msra.mxu0 0.0
    %292 = vmatprep.subr.mxu0 0.0
    %293 = vmatpush1.msra.mxu0 0.0
    %294 = vmatprep.subr.mxu0 0.0
    %295 = vmatpush1.msra.mxu0 0.0
    %296 = vmatprep.subr.mxu0 0.0
    %297 = vmatpush1.msra.mxu0 0.0
    %298 = vmatprep.subr.mxu0 0.0
    %299 = vmatpush1.msra.mxu0 0.0
    %300 = vmatprep.subr.mxu0 0.0
    %301 = vmatpush1.msra.mxu0 0.0
    %302 = vmatprep.subr.mxu0 0.0
    %303 = vmatpush1.msra.mxu0 0.0
    %304 = vmatprep.subr.mxu0 0.0
    %305 = vmatpush1.msra.mxu0 0.0
    %306 = vmatprep.subr.mxu0 0.0
    %307 = vmatpush1.msra.mxu0 0.0
    %308 = vmatprep.subr.mxu0 0.0
    %309 = vmatpush1.msra.mxu0 0.0
    %310 = vmatprep.subr.mxu0 0.0
    %311 = vmatpush1.msra.mxu0 0.0
    %312 = vmatprep.subr.mxu0 0.0
    %313 = vmatpush1.msra.mxu0 0.0
    %314 = vmatprep.subr.mxu0 0.0
    %315 = vmatpush1.msra.mxu0 0.0
    %316 = vmatprep.subr.mxu0 0.0
    %317 = vmatpush1.msra.mxu0 0.0
    %318 = vmatprep.subr.mxu0 0.0
    %319 = vmatpush1.msra.mxu0 0.0
    %320 = vmatprep.subr.mxu0 0.0
    %321 = vmatpush1.msra.mxu0 0.0
    %322 = vmatprep.subr.mxu0 0.0
    %323 = vmatpush1.msra.mxu0 0.0
    %324 = vmatprep.subr.mxu0 0.0
    %325 = vmatpush1.msra.mxu0 0.0
    %326 = vmatprep.subr.mxu0 0.0
    %327 = vmatpush1.msra.mxu0 0.0
    %328 = vmatprep.subr.mxu0 0.0
    %329 = vmatpush1.msra.mxu0 0.0
    %330 = vmatprep.subr.mxu0 0.0
    %331 = vmatpush1.msra.mxu0 0.0
    %332 = vmatprep.subr.mxu0 0.0
    %333 = vmatpush1.msra.mxu0 0.0
    %334 = vmatprep.subr.mxu0 0.0
    %335 = vmatpush1.msra.mxu0 0.0
    %336 = vmatprep.subr.mxu0 0.0
    %337 = vmatpush1.msra.mxu0 0.0
    %338 = vmatprep.subr.mxu0 0.0
    %339 = vmatpush1.msra.mxu0 0.0
    %340 = vmatprep.subr.mxu0 0.0
    %341 = vmatpush1.msra.mxu0 0.0
    %342 = vmatprep.subr.mxu0 0.0
    %343 = vmatpush1.msra.mxu0 0.0
    %344 = vmatprep.subr.mxu0 0.0
    %345 = vmatpush1.msra.mxu0 0.0
    %346 = vmatprep.subr.mxu0 0.0
    %347 = vmatpush1.msra.mxu0 0.0
    %348 = vmatprep.subr.mxu0 0.0
    %349 = vmatpush1.msra.mxu0 0.0
    %350 = vmatprep.mubr.f32.mxu0 0.0
    %351 = vmatmul.mubr.f32.gmra.mrb[0].mxu0 %v97
    %v352 = vpop.f32.mrb[0].mxu0
    %v353 = vadd.f32 %v78, %v352
    %v354 = vpop.f32.mrb[0].mxu0
    %v355 = vadd.f32 %v78, %v354
    %356 = vmatprep.mubr.f32.mxu0 0.0
    %357 = vmatmul.mubr.f32.gmra.mrb[0].mxu0 %v100
    %v358 = vpop.f32.mrb[0].mxu0
    %v359 = vadd.f32 %v83, %v358
    %v360 = vpop.f32.mrb[0].mxu0
    %v361 = vadd.f32 %v83, %v360
    %362 = vmatprep.mubr.f32.mxu0 0.0
    %363 = vmatmul.mubr.f32.gmra.mrb[0].mxu0 %v103
    %v364 = vpop.f32.mrb[0].mxu0
    %v365 = vadd.f32 %v88, %v364
    %v366 = vpop.f32.mrb[0].mxu0
    %v367 = vadd.f32 %v88, %v366
    %368 = vmatprep.mubr.f32.mxu0 0.0
    %369 = vmatmul.mubr.f32.gmra.mrb[0].mxu0 %v106
    %v370 = vpop.f32.mrb[0].mxu0
    %v371 = vadd.f32 %v93, %v370
    %v372 = vpop.f32.mrb[0].mxu0
    %v373 = vadd.f32 %v93, %v372
    %374 = vdwg.mxu0
    %375 = vmatprep.subr.mxu0 %v46
    %376 = vmatpush1.msra.mxu0 %v45
    %377 = vmatprep.subr.mxu0 %v62
    %378 = vmatpush1.msra.mxu0 %v61
    %379 = vmatprep.subr.mxu0 0.0
    %380 = vmatpush1.msra.mxu0 0.0
    %381 = vmatprep.subr.mxu0 0.0
    %382 = vmatpush1.msra.mxu0 0.0
    %383 = vmatprep.subr.mxu0 0.0
    %384 = vmatpush1.msra.mxu0 0.0
    %385 = vmatprep.subr.mxu0 0.0
    %386 = vmatpush1.msra.mxu0 0.0
    %387 = vmatprep.subr.mxu0 0.0
    %388 = vmatpush1.msra.mxu0 0.0
    %389 = vmatprep.subr.mxu0 0.0
    %390 = vmatpush1.msra.mxu0 0.0
    %391 = vmatprep.subr.mxu0 0.0
    %392 = vmatpush1.msra.mxu0 0.0
    %393 = vmatprep.subr.mxu0 0.0
    %394 = vmatpush1.msra.mxu0 0.0
    %395 = vmatprep.subr.mxu0 0.0
    %396 = vmatpush1.msra.mxu0 0.0
    %397 = vmatprep.subr.mxu0 0.0
    %398 = vmatpush1.msra.mxu0 0.0
    %399 = vmatprep.subr.mxu0 0.0
    %400 = vmatpush1.msra.mxu0 0.0
    %401 = vmatprep.subr.mxu0 0.0
    %402 = vmatpush1.msra.mxu0 0.0
    %403 = vmatprep.subr.mxu0 0.0
    %404 = vmatpush1.msra.mxu0 0.0
    %405 = vmatprep.subr.mxu0 0.0
    %406 = vmatpush1.msra.mxu0 0.0
    %407 = vmatprep.subr.mxu0 0.0
    %408 = vmatpush1.msra.mxu0 0.0
    %409 = vmatprep.subr.mxu0 0.0
    %410 = vmatpush1.msra.mxu0 0.0
    %411 = vmatprep.subr.mxu0 0.0
    %412 = vmatpush1.msra.mxu0 0.0
    %413 = vmatprep.subr.mxu0 0.0
    %414 = vmatpush1.msra.mxu0 0.0
    %415 = vmatprep.subr.mxu0 0.0
    %416 = vmatpush1.msra.mxu0 0.0
    %417 = vmatprep.subr.mxu0 0.0
    %418 = vmatpush1.msra.mxu0 0.0
    %419 = vmatprep.subr.mxu0 0.0
    %420 = vmatpush1.msra.mxu0 0.0
    %421 = vmatprep.subr.mxu0 0.0
    %422 = vmatpush1.msra.mxu0 0.0
    %423 = vmatprep.subr.mxu0 0.0
    %424 = vmatpush1.msra.mxu0 0.0
    %425 = vmatprep.subr.mxu0 0.0
    %426 = vmatpush1.msra.mxu0 0.0
    %427 = vmatprep.subr.mxu0 0.0
    %428 = vmatpush1.msra.mxu0 0.0
    %429 = vmatprep.subr.mxu0 0.0
    %430 = vmatpush1.msra.mxu0 0.0
    %431 = vmatprep.subr.mxu0 0.0
    %432 = vmatpush1.msra.mxu0 0.0
    %433 = vmatprep.subr.mxu0 0.0
    %434 = vmatpush1.msra.mxu0 0.0
    %435 = vmatprep.subr.mxu0 0.0
    %436 = vmatpush1.msra.mxu0 0.0
    %437 = vmatprep.subr.mxu0 0.0
    %438 = vmatpush1.msra.mxu0 0.0
    %439 = vmatprep.mubr.f32.mxu0 0.0
    %440 = vmatmul.mubr.f32.gmra.mrb[0].mxu0 %v97
    %v441 = vpop.f32.mrb[0].mxu0
    %v442 = vadd.f32 %v78, %v441
    %v443 = vpop.f32.mrb[0].mxu0
    %v444 = vadd.f32 %v78, %v443
    %445 = vmatprep.mubr.f32.mxu0 0.0
    %446 = vmatmul.mubr.f32.gmra.mrb[0].mxu0 %v100
    %v447 = vpop.f32.mrb[0].mxu0
    %v448 = vadd.f32 %v83, %v447
    %v449 = vpop.f32.mrb[0].mxu0
    %v450 = vadd.f32 %v83, %v449
    %451 = vmatprep.mubr.f32.mxu0 0.0
    %452 = vmatmul.mubr.f32.gmra.mrb[0].mxu0 %v103
    %v453 = vpop.f32.mrb[0].mxu0
    %v454 = vadd.f32 %v88, %v453
    %v455 = vpop.f32.mrb[0].mxu0
    %v456 = vadd.f32 %v88, %v455
    %457 = vmatprep.mubr.f32.mxu0 0.0
    %458 = vmatmul.mubr.f32.gmra.mrb[0].mxu0 %v106
    %v459 = vpop.f32.mrb[0].mxu0
    %v460 = vadd.f32 %v93, %v459
    %v461 = vpop.f32.mrb[0].mxu0
    %v462 = vadd.f32 %v93, %v461
    %463 = vdwg.mxu0
    %464 = vmatprep.subr.mxu0 %v48
    %465 = vmatpush1.msra.mxu0 %v47
    %466 = vmatprep.subr.mxu0 %v64
    %467 = vmatpush1.msra.mxu0 %v63
    %468 = vmatprep.subr.mxu0 0.0
    %469 = vmatpush1.msra.mxu0 0.0
    %470 = vmatprep.subr.mxu0 0.0
    %471 = vmatpush1.msra.mxu0 0.0
    %472 = vmatprep.subr.mxu0 0.0
    %473 = vmatpush1.msra.mxu0 0.0
    %474 = vmatprep.subr.mxu0 0.0
    %475 = vmatpush1.msra.mxu0 0.0
    %476 = vmatprep.subr.mxu0 0.0
    %477 = vmatpush1.msra.mxu0 0.0
    %478 = vmatprep.subr.mxu0 0.0
    %479 = vmatpush1.msra.mxu0 0.0
    %480 = vmatprep.subr.mxu0 0.0
    %481 = vmatpush1.msra.mxu0 0.0
    %482 = vmatprep.subr.mxu0 0.0
    %483 = vmatpush1.msra.mxu0 0.0
    %484 = vmatprep.subr.mxu0 0.0
    %485 = vmatpush1.msra.mxu0 0.0
    %486 = vmatprep.subr.mxu0 0.0
    %487 = vmatpush1.msra.mxu0 0.0
    %488 = vmatprep.subr.mxu0 0.0
    %489 = vmatpush1.msra.mxu0 0.0
    %490 = vmatprep.subr.mxu0 0.0
    %491 = vmatpush1.msra.mxu0 0.0
    %492 = vmatprep.subr.mxu0 0.0
    %493 = vmatpush1.msra.mxu0 0.0
    %494 = vmatprep.subr.mxu0 0.0
    %495 = vmatpush1.msra.mxu0 0.0
    %496 = vmatprep.subr.mxu0 0.0
    %497 = vmatpush1.msra.mxu0 0.0
    %498 = vmatprep.subr.mxu0 0.0
    %499 = vmatpush1.msra.mxu0 0.0
    %500 = vmatprep.subr.mxu0 0.0
    %501 = vmatpush1.msra.mxu0 0.0
    %502 = vmatprep.subr.mxu0 0.0
    %503 = vmatpush1.msra.mxu0 0.0
    %504 = vmatprep.subr.mxu0 0.0
    %505 = vmatpush1.msra.mxu0 0.0
    %506 = vmatprep.subr.mxu0 0.0
    %507 = vmatpush1.msra.mxu0 0.0
    %508 = vmatprep.subr.mxu0 0.0
    %509 = vmatpush1.msra.mxu0 0.0
    %510 = vmatprep.subr.mxu0 0.0
    %511 = vmatpush1.msra.mxu0 0.0
    %512 = vmatprep.subr.mxu0 0.0
    %513 = vmatpush1.msra.mxu0 0.0
    %514 = vmatprep.subr.mxu0 0.0
    %515 = vmatpush1.msra.mxu0 0.0
    %516 = vmatprep.subr.mxu0 0.0
    %517 = vmatpush1.msra.mxu0 0.0
    %518 = vmatprep.subr.mxu0 0.0
    %519 = vmatpush1.msra.mxu0 0.0
    %520 = vmatprep.subr.mxu0 0.0
    %521 = vmatpush1.msra.mxu0 0.0
    %522 = vmatprep.subr.mxu0 0.0
    %523 = vmatpush1.msra.mxu0 0.0
    %524 = vmatprep.subr.mxu0 0.0
    %525 = vmatpush1.msra.mxu0 0.0
    %526 = vmatprep.subr.mxu0 0.0
    %527 = vmatpush1.msra.mxu0 0.0
    %528 = vmatprep.mubr.f32.mxu0 0.0
    %529 = vmatmul.mubr.f32.gmra.mrb[0].mxu0 %v97
    %v530 = vpop.f32.mrb[0].mxu0
    %v531 = vadd.f32 %v78, %v530
    %v532 = vpop.f32.mrb[0].mxu0
    %v533 = vadd.f32 %v78, %v532
    %534 = vmatprep.mubr.f32.mxu0 0.0
    %535 = vmatmul.mubr.f32.gmra.mrb[0].mxu0 %v100
    %v536 = vpop.f32.mrb[0].mxu0
    %v537 = vadd.f32 %v83, %v536
    %v538 = vpop.f32.mrb[0].mxu0
    %v539 = vadd.f32 %v83, %v538
    %540 = vmatprep.mubr.f32.mxu0 0.0
    %541 = vmatmul.mubr.f32.gmra.mrb[0].mxu0 %v103
    %v542 = vpop.f32.mrb[0].mxu0
    %v543 = vadd.f32 %v88, %v542
    %v544 = vpop.f32.mrb[0].mxu0
    %v545 = vadd.f32 %v88, %v544
    %546 = vmatprep.mubr.f32.mxu0 0.0
    %547 = vmatmul.mubr.f32.gmra.mrb[0].mxu0 %v106
    %v548 = vpop.f32.mrb[0].mxu0
    %v549 = vadd.f32 %v93, %v548
    %v550 = vpop.f32.mrb[0].mxu0
    %v551 = vadd.f32 %v93, %v550
    %552 = vdwg.mxu0
    %553 = vmatprep.subr.mxu0 %v50
    %554 = vmatpush1.msra.mxu0 %v49
    %555 = vmatprep.subr.mxu0 %v66
    %556 = vmatpush1.msra.mxu0 %v65
    %557 = vmatprep.subr.mxu0 0.0
    %558 = vmatpush1.msra.mxu0 0.0
    %559 = vmatprep.subr.mxu0 0.0
    %560 = vmatpush1.msra.mxu0 0.0
    %561 = vmatprep.subr.mxu0 0.0
    %562 = vmatpush1.msra.mxu0 0.0
    %563 = vmatprep.subr.mxu0 0.0
    %564 = vmatpush1.msra.mxu0 0.0
    %565 = vmatprep.subr.mxu0 0.0
    %566 = vmatpush1.msra.mxu0 0.0
    %567 = vmatprep.subr.mxu0 0.0
    %568 = vmatpush1.msra.mxu0 0.0
    %569 = vmatprep.subr.mxu0 0.0
    %570 = vmatpush1.msra.mxu0 0.0
    %571 = vmatprep.subr.mxu0 0.0
    %572 = vmatpush1.msra.mxu0 0.0
    %573 = vmatprep.subr.mxu0 0.0
    %574 = vmatpush1.msra.mxu0 0.0
    %575 = vmatprep.subr.mxu0 0.0
    %576 = vmatpush1.msra.mxu0 0.0
    %577 = vmatprep.subr.mxu0 0.0
    %578 = vmatpush1.msra.mxu0 0.0
    %579 = vmatprep.subr.mxu0 0.0
    %580 = vmatpush1.msra.mxu0 0.0
    %581 = vmatprep.subr.mxu0 0.0
    %582 = vmatpush1.msra.mxu0 0.0
    %583 = vmatprep.subr.mxu0 0.0
    %584 = vmatpush1.msra.mxu0 0.0
    %585 = vmatprep.subr.mxu0 0.0
    %586 = vmatpush1.msra.mxu0 0.0
    %587 = vmatprep.subr.mxu0 0.0
    %588 = vmatpush1.msra.mxu0 0.0
    %589 = vmatprep.subr.mxu0 0.0
    %590 = vmatpush1.msra.mxu0 0.0
    %591 = vmatprep.subr.mxu0 0.0
    %592 = vmatpush1.msra.mxu0 0.0
    %593 = vmatprep.subr.mxu0 0.0
    %594 = vmatpush1.msra.mxu0 0.0
    %595 = vmatprep.subr.mxu0 0.0
    %596 = vmatpush1.msra.mxu0 0.0
    %597 = vmatprep.subr.mxu0 0.0
    %598 = vmatpush1.msra.mxu0 0.0
    %599 = vmatprep.subr.mxu0 0.0
    %600 = vmatpush1.msra.mxu0 0.0
    %601 = vmatprep.subr.mxu0 0.0
    %602 = vmatpush1.msra.mxu0 0.0
    %603 = vmatprep.subr.mxu0 0.0
    %604 = vmatpush1.msra.mxu0 0.0
    %605 = vmatprep.subr.mxu0 0.0
    %606 = vmatpush1.msra.mxu0 0.0
    %607 = vmatprep.subr.mxu0 0.0
    %608 = vmatpush1.msra.mxu0 0.0
    %609 = vmatprep.subr.mxu0 0.0
    %610 = vmatpush1.msra.mxu0 0.0
    %611 = vmatprep.subr.mxu0 0.0
    %612 = vmatpush1.msra.mxu0 0.0
    %613 = vmatprep.subr.mxu0 0.0
    %614 = vmatpush1.msra.mxu0 0.0
    %615 = vmatprep.subr.mxu0 0.0
    %616 = vmatpush1.msra.mxu0 0.0
    %617 = vmatprep.mubr.f32.mxu0 0.0
    %618 = vmatmul.mubr.f32.gmra.mrb[0].mxu0 %v97
    %v619 = vpop.f32.mrb[0].mxu0
    %v620 = vadd.f32 %v78, %v619
    %v621 = vpop.f32.mrb[0].mxu0
    %v622 = vadd.f32 %v78, %v621
    %623 = vmatprep.mubr.f32.mxu0 0.0
    %624 = vmatmul.mubr.f32.gmra.mrb[0].mxu0 %v100
    %v625 = vpop.f32.mrb[0].mxu0
    %v626 = vadd.f32 %v83, %v625
    %v627 = vpop.f32.mrb[0].mxu0
    %v628 = vadd.f32 %v83, %v627
    %629 = vmatprep.mubr.f32.mxu0 0.0
    %630 = vmatmul.mubr.f32.gmra.mrb[0].mxu0 %v103
    %v631 = vpop.f32.mrb[0].mxu0
    %v632 = vadd.f32 %v88, %v631
    %v633 = vpop.f32.mrb[0].mxu0
    %v634 = vadd.f32 %v88, %v633
    %635 = vmatprep.mubr.f32.mxu0 0.0
    %636 = vmatmul.mubr.f32.gmra.mrb[0].mxu0 %v106
    %v637 = vpop.f32.mrb[0].mxu0
    %v638 = vadd.f32 %v93, %v637
    %v639 = vpop.f32.mrb[0].mxu0
    %v640 = vadd.f32 %v93, %v639
    %641 = vdwg.mxu0
    %642 = vmatprep.subr.mxu0 %v52
    %643 = vmatpush1.msra.mxu0 %v51
    %644 = vmatprep.subr.mxu0 %v68
    %645 = vmatpush1.msra.mxu0 %v67
    %646 = vmatprep.subr.mxu0 0.0
    %647 = vmatpush1.msra.mxu0 0.0
    %648 = vmatprep.subr.mxu0 0.0
    %649 = vmatpush1.msra.mxu0 0.0
    %650 = vmatprep.subr.mxu0 0.0
    %651 = vmatpush1.msra.mxu0 0.0
    %652 = vmatprep.subr.mxu0 0.0
    %653 = vmatpush1.msra.mxu0 0.0
    %654 = vmatprep.subr.mxu0 0.0
    %655 = vmatpush1.msra.mxu0 0.0
    %656 = vmatprep.subr.mxu0 0.0
    %657 = vmatpush1.msra.mxu0 0.0
    %658 = vmatprep.subr.mxu0 0.0
    %659 = vmatpush1.msra.mxu0 0.0
    %660 = vmatprep.subr.mxu0 0.0
    %661 = vmatpush1.msra.mxu0 0.0
    %662 = vmatprep.subr.mxu0 0.0
    %663 = vmatpush1.msra.mxu0 0.0
    %664 = vmatprep.subr.mxu0 0.0
    %665 = vmatpush1.msra.mxu0 0.0
    %666 = vmatprep.subr.mxu0 0.0
    %667 = vmatpush1.msra.mxu0 0.0
    %668 = vmatprep.subr.mxu0 0.0
    %669 = vmatpush1.msra.mxu0 0.0
    %670 = vmatprep.subr.mxu0 0.0
    %671 = vmatpush1.msra.mxu0 0.0
    %672 = vmatprep.subr.mxu0 0.0
    %673 = vmatpush1.msra.mxu0 0.0
    %674 = vmatprep.subr.mxu0 0.0
    %675 = vmatpush1.msra.mxu0 0.0
    %676 = vmatprep.subr.mxu0 0.0
    %677 = vmatpush1.msra.mxu0 0.0
    %678 = vmatprep.subr.mxu0 0.0
    %679 = vmatpush1.msra.mxu0 0.0
    %680 = vmatprep.subr.mxu0 0.0
    %681 = vmatpush1.msra.mxu0 0.0
    %682 = vmatprep.subr.mxu0 0.0
    %683 = vmatpush1.msra.mxu0 0.0
    %684 = vmatprep.subr.mxu0 0.0
    %685 = vmatpush1.msra.mxu0 0.0
    %686 = vmatprep.subr.mxu0 0.0
    %687 = vmatpush1.msra.mxu0 0.0
    %688 = vmatprep.subr.mxu0 0.0
    %689 = vmatpush1.msra.mxu0 0.0
    %690 = vmatprep.subr.mxu0 0.0
    %691 = vmatpush1.msra.mxu0 0.0
    %692 = vmatprep.subr.mxu0 0.0
    %693 = vmatpush1.msra.mxu0 0.0
    %694 = vmatprep.subr.mxu0 0.0
    %695 = vmatpush1.msra.mxu0 0.0
    %696 = vmatprep.subr.mxu0 0.0
    %697 = vmatpush1.msra.mxu0 0.0
    %698 = vmatprep.subr.mxu0 0.0
    %699 = vmatpush1.msra.mxu0 0.0
    %700 = vmatprep.subr.mxu0 0.0
    %701 = vmatpush1.msra.mxu0 0.0
    %702 = vmatprep.subr.mxu0 0.0
    %703 = vmatpush1.msra.mxu0 0.0
    %704 = vmatprep.subr.mxu0 0.0
    %705 = vmatpush1.msra.mxu0 0.0
    %706 = vmatprep.mubr.f32.mxu0 0.0
    %707 = vmatmul.mubr.f32.gmra.mrb[0].mxu0 %v97
    %v708 = vpop.f32.mrb[0].mxu0
    %v709 = vadd.f32 %v78, %v708
    %v710 = vpop.f32.mrb[0].mxu0
    %v711 = vadd.f32 %v78, %v710
    %712 = vmatprep.mubr.f32.mxu0 0.0
    %713 = vmatmul.mubr.f32.gmra.mrb[0].mxu0 %v100
    %v714 = vpop.f32.mrb[0].mxu0
    %v715 = vadd.f32 %v83, %v714
    %v716 = vpop.f32.mrb[0].mxu0
    %v717 = vadd.f32 %v83, %v716
    %718 = vmatprep.mubr.f32.mxu0 0.0
    %719 = vmatmul.mubr.f32.gmra.mrb[0].mxu0 %v103
    %v720 = vpop.f32.mrb[0].mxu0
    %v721 = vadd.f32 %v88, %v720
    %v722 = vpop.f32.mrb[0].mxu0
    %v723 = vadd.f32 %v88, %v722
    %724 = vmatprep.mubr.f32.mxu0 0.0
    %725 = vmatmul.mubr.f32.gmra.mrb[0].mxu0 %v106
    %v726 = vpop.f32.mrb[0].mxu0
    %v727 = vadd.f32 %v93, %v726
    %v728 = vpop.f32.mrb[0].mxu0
    %v729 = vadd.f32 %v93, %v728
    %730 = vdwg.mxu0
    %731 = vmatprep.subr.mxu0 %v54
    %732 = vmatpush1.msra.mxu0 %v53
    %733 = vmatprep.subr.mxu0 %v70
    %734 = vmatpush1.msra.mxu0 %v69
    %735 = vmatprep.subr.mxu0 0.0
    %736 = vmatpush1.msra.mxu0 0.0
    %737 = vmatprep.subr.mxu0 0.0
    %738 = vmatpush1.msra.mxu0 0.0
    %739 = vmatprep.subr.mxu0 0.0
    %740 = vmatpush1.msra.mxu0 0.0
    %741 = vmatprep.subr.mxu0 0.0
    %742 = vmatpush1.msra.mxu0 0.0
    %743 = vmatprep.subr.mxu0 0.0
    %744 = vmatpush1.msra.mxu0 0.0
    %745 = vmatprep.subr.mxu0 0.0
    %746 = vmatpush1.msra.mxu0 0.0
    %747 = vmatprep.subr.mxu0 0.0
    %748 = vmatpush1.msra.mxu0 0.0
    %749 = vmatprep.subr.mxu0 0.0
    %750 = vmatpush1.msra.mxu0 0.0
    %751 = vmatprep.subr.mxu0 0.0
    %752 = vmatpush1.msra.mxu0 0.0
    %753 = vmatprep.subr.mxu0 0.0
    %754 = vmatpush1.msra.mxu0 0.0
    %755 = vmatprep.subr.mxu0 0.0
    %756 = vmatpush1.msra.mxu0 0.0
    %757 = vmatprep.subr.mxu0 0.0
    %758 = vmatpush1.msra.mxu0 0.0
    %759 = vmatprep.subr.mxu0 0.0
    %760 = vmatpush1.msra.mxu0 0.0
    %761 = vmatprep.subr.mxu0 0.0
    %762 = vmatpush1.msra.mxu0 0.0
    %763 = vmatprep.subr.mxu0 0.0
    %764 = vmatpush1.msra.mxu0 0.0
    %765 = vmatprep.subr.mxu0 0.0
    %766 = vmatpush1.msra.mxu0 0.0
    %767 = vmatprep.subr.mxu0 0.0
    %768 = vmatpush1.msra.mxu0 0.0
    %769 = vmatprep.subr.mxu0 0.0
    %770 = vmatpush1.msra.mxu0 0.0
    %771 = vmatprep.subr.mxu0 0.0
    %772 = vmatpush1.msra.mxu0 0.0
    %773 = vmatprep.subr.mxu0 0.0
    %774 = vmatpush1.msra.mxu0 0.0
    %775 = vmatprep.subr.mxu0 0.0
    %776 = vmatpush1.msra.mxu0 0.0
    %777 = vmatprep.subr.mxu0 0.0
    %778 = vmatpush1.msra.mxu0 0.0
    %779 = vmatprep.subr.mxu0 0.0
    %780 = vmatpush1.msra.mxu0 0.0
    %781 = vmatprep.subr.mxu0 0.0
    %782 = vmatpush1.msra.mxu0 0.0
    %783 = vmatprep.subr.mxu0 0.0
    %784 = vmatpush1.msra.mxu0 0.0
    %785 = vmatprep.subr.mxu0 0.0
    %786 = vmatpush1.msra.mxu0 0.0
    %787 = vmatprep.subr.mxu0 0.0
    %788 = vmatpush1.msra.mxu0 0.0
    %789 = vmatprep.subr.mxu0 0.0
    %790 = vmatpush1.msra.mxu0 0.0
    %791 = vmatprep.subr.mxu0 0.0
    %792 = vmatpush1.msra.mxu0 0.0
    %793 = vmatprep.subr.mxu0 0.0
    %794 = vmatpush1.msra.mxu0 0.0
    %795 = vmatprep.mubr.f32.mxu0 0.0
    %796 = vmatmul.mubr.f32.gmra.mrb[0].mxu0 %v97
    %v797 = vpop.f32.mrb[0].mxu0
    %v798 = vadd.f32 %v78, %v797
    %v799 = vpop.f32.mrb[0].mxu0
    %v800 = vadd.f32 %v78, %v799
    %801 = vmatprep.mubr.f32.mxu0 0.0
    %802 = vmatmul.mubr.f32.gmra.mrb[0].mxu0 %v100
    %v803 = vpop.f32.mrb[0].mxu0
    %v804 = vadd.f32 %v83, %v803
    %v805 = vpop.f32.mrb[0].mxu0
    %v806 = vadd.f32 %v83, %v805
    %807 = vmatprep.mubr.f32.mxu0 0.0
    %808 = vmatmul.mubr.f32.gmra.mrb[0].mxu0 %v103
    %v809 = vpop.f32.mrb[0].mxu0
    %v810 = vadd.f32 %v88, %v809
    %v811 = vpop.f32.mrb[0].mxu0
    %v812 = vadd.f32 %v88, %v811
    %813 = vmatprep.mubr.f32.mxu0 0.0
    %814 = vmatmul.mubr.f32.gmra.mrb[0].mxu0 %v106
    %v815 = vpop.f32.mrb[0].mxu0
    %v816 = vadd.f32 %v93, %v815
    %v817 = vpop.f32.mrb[0].mxu0
    %v818 = vadd.f32 %v93, %v817
    %819 = vdwg.mxu0
    %v820 = vmax.f32 %v175, 0.0
    %v821 = vmax.f32 %v177, 0.0
    %v822 = vmax.f32 %v264, 0.0
    %v823 = vmax.f32 %v266, 0.0
    %v824 = vmax.f32 %v353, 0.0
    %v825 = vmax.f32 %v355, 0.0
    %v826 = vmax.f32 %v442, 0.0
    %v827 = vmax.f32 %v444, 0.0
    %v828 = vmax.f32 %v531, 0.0
    %v829 = vmax.f32 %v533, 0.0
    %v830 = vmax.f32 %v620, 0.0
    %v831 = vmax.f32 %v622, 0.0
    %v832 = vmax.f32 %v709, 0.0
    %v833 = vmax.f32 %v711, 0.0
    %v834 = vmax.f32 %v798, 0.0
    %v835 = vmax.f32 %v800, 0.0
    %v836 = vmax.f32 %v181, 0.0
    %v837 = vmax.f32 %v183, 0.0
    %v838 = vmax.f32 %v270, 0.0
    %v839 = vmax.f32 %v272, 0.0
    %v840 = vmax.f32 %v359, 0.0
    %v841 = vmax.f32 %v361, 0.0
    %v842 = vmax.f32 %v448, 0.0
    %v843 = vmax.f32 %v450, 0.0
    %v844 = vmax.f32 %v537, 0.0
    %v845 = vmax.f32 %v539, 0.0
    %v846 = vmax.f32 %v626, 0.0
    %v847 = vmax.f32 %v628, 0.0
    %v848 = vmax.f32 %v715, 0.0
    %v849 = vmax.f32 %v717, 0.0
    %v850 = vmax.f32 %v804, 0.0
    %v851 = vmax.f32 %v806, 0.0
    %v852 = vmax.f32 %v187, 0.0
    %v853 = vmax.f32 %v189, 0.0
    %v854 = vmax.f32 %v276, 0.0
    %v855 = vmax.f32 %v278, 0.0
    %v856 = vmax.f32 %v365, 0.0
    %v857 = vmax.f32 %v367, 0.0
    %v858 = vmax.f32 %v454, 0.0
    %v859 = vmax.f32 %v456, 0.0
    %v860 = vmax.f32 %v543, 0.0
    %v861 = vmax.f32 %v545, 0.0
    %v862 = vmax.f32 %v632, 0.0
    %v863 = vmax.f32 %v634, 0.0
    %v864 = vmax.f32 %v721, 0.0
    %v865 = vmax.f32 %v723, 0.0
    %v866 = vmax.f32 %v810, 0.0
    %v867 = vmax.f32 %v812, 0.0
    %v868 = vmax.f32 %v193, 0.0
    %v869 = vmax.f32 %v195, 0.0
    %v870 = vmax.f32 %v282, 0.0
    %v871 = vmax.f32 %v284, 0.0
    %v872 = vmax.f32 %v371, 0.0
    %v873 = vmax.f32 %v373, 0.0
    %v874 = vmax.f32 %v460, 0.0
    %v875 = vmax.f32 %v462, 0.0
    %v876 = vmax.f32 %v549, 0.0
    %v877 = vmax.f32 %v551, 0.0
    %v878 = vmax.f32 %v638, 0.0
    %v879 = vmax.f32 %v640, 0.0
    %v880 = vmax.f32 %v727, 0.0
    %v881 = vmax.f32 %v729, 0.0
    %v882 = vmax.f32 %v816, 0.0
    %v883 = vmax.f32 %v818, 0.0
    %v884 = vld [vmem:[%s3] sm:$0xff]
    %v885 = vld [vmem:[%s4] sm:$0xff]
    %887 = vset.pattern.permute.xlu0 0
    %888 = vperm.xlu0 %887, %v885
    %v889 = vpop.permute.xlu0 %888
    %vm891 = vcmask 261120
    %v893 = vsel %vm891, %v884, 0
    %895 = vmatprep.subr.mxu0 %v821
    %896 = vmatpush1.msra.mxu0 %v820
    %897 = vmatprep.subr.mxu0 %v837
    %898 = vmatpush1.msra.mxu0 %v836
    %899 = vmatprep.subr.mxu0 %v853
    %900 = vmatpush1.msra.mxu0 %v852
    %901 = vmatprep.subr.mxu0 %v869
    %902 = vmatpush1.msra.mxu0 %v868
    %903 = vmatprep.subr.mxu0 0.0
    %904 = vmatpush1.msra.mxu0 0.0
    %905 = vmatprep.subr.mxu0 0.0
    %906 = vmatpush1.msra.mxu0 0.0
    %907 = vmatprep.subr.mxu0 0.0
    %908 = vmatpush1.msra.mxu0 0.0
    %909 = vmatprep.subr.mxu0 0.0
    %910 = vmatpush1.msra.mxu0 0.0
    %911 = vmatprep.subr.mxu0 0.0
    %912 = vmatpush1.msra.mxu0 0.0
    %913 = vmatprep.subr.mxu0 0.0
    %914 = vmatpush1.msra.mxu0 0.0
    %915 = vmatprep.subr.mxu0 0.0
    %916 = vmatpush1.msra.mxu0 0.0
    %917 = vmatprep.subr.mxu0 0.0
    %918 = vmatpush1.msra.mxu0 0.0
    %919 = vmatprep.subr.mxu0 0.0
    %920 = vmatpush1.msra.mxu0 0.0
    %921 = vmatprep.subr.mxu0 0.0
    %922 = vmatpush1.msra.mxu0 0.0
    %923 = vmatprep.subr.mxu0 0.0
    %924 = vmatpush1.msra.mxu0 0.0
    %925 = vmatprep.subr.mxu0 0.0
    %926 = vmatpush1.msra.mxu0 0.0
    %927 = vmatprep.subr.mxu0 0.0
    %928 = vmatpush1.msra.mxu0 0.0
    %929 = vmatprep.subr.mxu0 0.0
    %930 = vmatpush1.msra.mxu0 0.0
    %931 = vmatprep.subr.mxu0 0.0
    %932 = vmatpush1.msra.mxu0 0.0
    %933 = vmatprep.subr.mxu0 0.0
    %934 = vmatpush1.msra.mxu0 0.0
    %935 = vmatprep.subr.mxu0 0.0
    %936 = vmatpush1.msra.mxu0 0.0
    %937 = vmatprep.subr.mxu0 0.0
    %938 = vmatpush1.msra.mxu0 0.0
    %939 = vmatprep.subr.mxu0 0.0
    %940 = vmatpush1.msra.mxu0 0.0
    %941 = vmatprep.subr.mxu0 0.0
    %942 = vmatpush1.msra.mxu0 0.0
    %943 = vmatprep.subr.mxu0 0.0
    %944 = vmatpush1.msra.mxu0 0.0
    %945 = vmatprep.subr.mxu0 0.0
    %946 = vmatpush1.msra.mxu0 0.0
    %947 = vmatprep.subr.mxu0 0.0
    %948 = vmatpush1.msra.mxu0 0.0
    %949 = vmatprep.subr.mxu0 0.0
    %950 = vmatpush1.msra.mxu0 0.0
    %951 = vmatprep.subr.mxu0 0.0
    %952 = vmatpush1.msra.mxu0 0.0
    %953 = vmatprep.subr.mxu0 0.0
    %954 = vmatpush1.msra.mxu0 0.0
    %955 = vmatprep.subr.mxu0 0.0
    %956 = vmatpush1.msra.mxu0 0.0
    %957 = vmatprep.subr.mxu0 0.0
    %958 = vmatpush1.msra.mxu0 0.0
    %959 = vmatprep.mubr.f32.mxu0 0.0
    %960 = vmatmul.mubr.f32.gmra.mrb[0].mxu0 %v893
    %v961 = vpop.f32.mrb[0].mxu0
    %v962 = vadd.f32 %v889, %v961
    %v963 = vpop.f32.mrb[0].mxu0
    %v964 = vadd.f32 %v889, %v963
    %965 = vdwg.mxu0
    %966 = vmatprep.subr.mxu0 %v823
    %967 = vmatpush1.msra.mxu0 %v822
    %968 = vmatprep.subr.mxu0 %v839
    %969 = vmatpush1.msra.mxu0 %v838
    %970 = vmatprep.subr.mxu0 %v855
    %971 = vmatpush1.msra.mxu0 %v854
    %972 = vmatprep.subr.mxu0 %v871
    %973 = vmatpush1.msra.mxu0 %v870
    %974 = vmatprep.subr.mxu0 0.0
    %975 = vmatpush1.msra.mxu0 0.0
    %976 = vmatprep.subr.mxu0 0.0
    %977 = vmatpush1.msra.mxu0 0.0
    %978 = vmatprep.subr.mxu0 0.0
    %979 = vmatpush1.msra.mxu0 0.0
    %980 = vmatprep.subr.mxu0 0.0
    %981 = vmatpush1.msra.mxu0 0.0
    %982 = vmatprep.subr.mxu0 0.0
    %983 = vmatpush1.msra.mxu0 0.0
    %984 = vmatprep.subr.mxu0 0.0
    %985 = vmatpush1.msra.mxu0 0.0
    %986 = vmatprep.subr.mxu0 0.0
    %987 = vmatpush1.msra.mxu0 0.0
    %988 = vmatprep.subr.mxu0 0.0
    %989 = vmatpush1.msra.mxu0 0.0
    %990 = vmatprep.subr.mxu0 0.0
    %991 = vmatpush1.msra.mxu0 0.0
    %992 = vmatprep.subr.mxu0 0.0
    %993 = vmatpush1.msra.mxu0 0.0
    %994 = vmatprep.subr.mxu0 0.0
    %995 = vmatpush1.msra.mxu0 0.0
    %996 = vmatprep.subr.mxu0 0.0
    %997 = vmatpush1.msra.mxu0 0.0
    %998 = vmatprep.subr.mxu0 0.0
    %999 = vmatpush1.msra.mxu0 0.0
    %1000 = vmatprep.subr.mxu0 0.0
    %1001 = vmatpush1.msra.mxu0 0.0
    %1002 = vmatprep.subr.mxu0 0.0
    %1003 = vmatpush1.msra.mxu0 0.0
    %1004 = vmatprep.subr.mxu0 0.0
    %1005 = vmatpush1.msra.mxu0 0.0
    %1006 = vmatprep.subr.mxu0 0.0
    %1007 = vmatpush1.msra.mxu0 0.0
    %1008 = vmatprep.subr.mxu0 0.0
    %1009 = vmatpush1.msra.mxu0 0.0
    %1010 = vmatprep.subr.mxu0 0.0
    %1011 = vmatpush1.msra.mxu0 0.0
    %1012 = vmatprep.subr.mxu0 0.0
    %1013 = vmatpush1.msra.mxu0 0.0
    %1014 = vmatprep.subr.mxu0 0.0
    %1015 = vmatpush1.msra.mxu0 0.0
    %1016 = vmatprep.subr.mxu0 0.0
    %1017 = vmatpush1.msra.mxu0 0.0
    %1018 = vmatprep.subr.mxu0 0.0
    %1019 = vmatpush1.msra.mxu0 0.0
    %1020 = vmatprep.subr.mxu0 0.0
    %1021 = vmatpush1.msra.mxu0 0.0
    %1022 = vmatprep.subr.mxu0 0.0
    %1023 = vmatpush1.msra.mxu0 0.0
    %1024 = vmatprep.subr.mxu0 0.0
    %1025 = vmatpush1.msra.mxu0 0.0
    %1026 = vmatprep.subr.mxu0 0.0
    %1027 = vmatpush1.msra.mxu0 0.0
    %1028 = vmatprep.subr.mxu0 0.0
    %1029 = vmatpush1.msra.mxu0 0.0
    %1030 = vmatprep.mubr.f32.mxu0 0.0
    %1031 = vmatmul.mubr.f32.gmra.mrb[0].mxu0 %v893
    %v1032 = vpop.f32.mrb[0].mxu0
    %v1033 = vadd.f32 %v889, %v1032
    %v1034 = vpop.f32.mrb[0].mxu0
    %v1035 = vadd.f32 %v889, %v1034
    %1036 = vdwg.mxu0
    %1037 = vmatprep.subr.mxu0 %v825
    %1038 = vmatpush1.msra.mxu0 %v824
    %1039 = vmatprep.subr.mxu0 %v841
    %1040 = vmatpush1.msra.mxu0 %v840
    %1041 = vmatprep.subr.mxu0 %v857
    %1042 = vmatpush1.msra.mxu0 %v856
    %1043 = vmatprep.subr.mxu0 %v873
    %1044 = vmatpush1.msra.mxu0 %v872
    %1045 = vmatprep.subr.mxu0 0.0
    %1046 = vmatpush1.msra.mxu0 0.0
    %1047 = vmatprep.subr.mxu0 0.0
    %1048 = vmatpush1.msra.mxu0 0.0
    %1049 = vmatprep.subr.mxu0 0.0
    %1050 = vmatpush1.msra.mxu0 0.0
    %1051 = vmatprep.subr.mxu0 0.0
    %1052 = vmatpush1.msra.mxu0 0.0
    %1053 = vmatprep.subr.mxu0 0.0
    %1054 = vmatpush1.msra.mxu0 0.0
    %1055 = vmatprep.subr.mxu0 0.0
    %1056 = vmatpush1.msra.mxu0 0.0
    %1057 = vmatprep.subr.mxu0 0.0
    %1058 = vmatpush1.msra.mxu0 0.0
    %1059 = vmatprep.subr.mxu0 0.0
    %1060 = vmatpush1.msra.mxu0 0.0
    %1061 = vmatprep.subr.mxu0 0.0
    %1062 = vmatpush1.msra.mxu0 0.0
    %1063 = vmatprep.subr.mxu0 0.0
    %1064 = vmatpush1.msra.mxu0 0.0
    %1065 = vmatprep.subr.mxu0 0.0
    %1066 = vmatpush1.msra.mxu0 0.0
    %1067 = vmatprep.subr.mxu0 0.0
    %1068 = vmatpush1.msra.mxu0 0.0
    %1069 = vmatprep.subr.mxu0 0.0
    %1070 = vmatpush1.msra.mxu0 0.0
    %1071 = vmatprep.subr.mxu0 0.0
    %1072 = vmatpush1.msra.mxu0 0.0
    %1073 = vmatprep.subr.mxu0 0.0
    %1074 = vmatpush1.msra.mxu0 0.0
    %1075 = vmatprep.subr.mxu0 0.0
    %1076 = vmatpush1.msra.mxu0 0.0
    %1077 = vmatprep.subr.mxu0 0.0
    %1078 = vmatpush1.msra.mxu0 0.0
    %1079 = vmatprep.subr.mxu0 0.0
    %1080 = vmatpush1.msra.mxu0 0.0
    %1081 = vmatprep.subr.mxu0 0.0
    %1082 = vmatpush1.msra.mxu0 0.0
    %1083 = vmatprep.subr.mxu0 0.0
    %1084 = vmatpush1.msra.mxu0 0.0
    %1085 = vmatprep.subr.mxu0 0.0
    %1086 = vmatpush1.msra.mxu0 0.0
    %1087 = vmatprep.subr.mxu0 0.0
    %1088 = vmatpush1.msra.mxu0 0.0
    %1089 = vmatprep.subr.mxu0 0.0
    %1090 = vmatpush1.msra.mxu0 0.0
    %1091 = vmatprep.subr.mxu0 0.0
    %1092 = vmatpush1.msra.mxu0 0.0
    %1093 = vmatprep.subr.mxu0 0.0
    %1094 = vmatpush1.msra.mxu0 0.0
    %1095 = vmatprep.subr.mxu0 0.0
    %1096 = vmatpush1.msra.mxu0 0.0
    %1097 = vmatprep.subr.mxu0 0.0
    %1098 = vmatpush1.msra.mxu0 0.0
    %1099 = vmatprep.subr.mxu0 0.0
    %1100 = vmatpush1.msra.mxu0 0.0
    %1101 = vmatprep.mubr.f32.mxu0 0.0
    %1102 = vmatmul.mubr.f32.gmra.mrb[0].mxu0 %v893
    %v1103 = vpop.f32.mrb[0].mxu0
    %v1104 = vadd.f32 %v889, %v1103
    %v1105 = vpop.f32.mrb[0].mxu0
    %v1106 = vadd.f32 %v889, %v1105
    %1107 = vdwg.mxu0
    %1108 = vmatprep.subr.mxu0 %v827
    %1109 = vmatpush1.msra.mxu0 %v826
    %1110 = vmatprep.subr.mxu0 %v843
    %1111 = vmatpush1.msra.mxu0 %v842
    %1112 = vmatprep.subr.mxu0 %v859
    %1113 = vmatpush1.msra.mxu0 %v858
    %1114 = vmatprep.subr.mxu0 %v875
    %1115 = vmatpush1.msra.mxu0 %v874
    %1116 = vmatprep.subr.mxu0 0.0
    %1117 = vmatpush1.msra.mxu0 0.0
    %1118 = vmatprep.subr.mxu0 0.0
    %1119 = vmatpush1.msra.mxu0 0.0
    %1120 = vmatprep.subr.mxu0 0.0
    %1121 = vmatpush1.msra.mxu0 0.0
    %1122 = vmatprep.subr.mxu0 0.0
    %1123 = vmatpush1.msra.mxu0 0.0
    %1124 = vmatprep.subr.mxu0 0.0
    %1125 = vmatpush1.msra.mxu0 0.0
    %1126 = vmatprep.subr.mxu0 0.0
    %1127 = vmatpush1.msra.mxu0 0.0
    %1128 = vmatprep.subr.mxu0 0.0
    %1129 = vmatpush1.msra.mxu0 0.0
    %1130 = vmatprep.subr.mxu0 0.0
    %1131 = vmatpush1.msra.mxu0 0.0
    %1132 = vmatprep.subr.mxu0 0.0
    %1133 = vmatpush1.msra.mxu0 0.0
    %1134 = vmatprep.subr.mxu0 0.0
    %1135 = vmatpush1.msra.mxu0 0.0
    %1136 = vmatprep.subr.mxu0 0.0
    %1137 = vmatpush1.msra.mxu0 0.0
    %1138 = vmatprep.subr.mxu0 0.0
    %1139 = vmatpush1.msra.mxu0 0.0
    %1140 = vmatprep.subr.mxu0 0.0
    %1141 = vmatpush1.msra.mxu0 0.0
    %1142 = vmatprep.subr.mxu0 0.0
    %1143 = vmatpush1.msra.mxu0 0.0
    %1144 = vmatprep.subr.mxu0 0.0
    %1145 = vmatpush1.msra.mxu0 0.0
    %1146 = vmatprep.subr.mxu0 0.0
    %1147 = vmatpush1.msra.mxu0 0.0
    %1148 = vmatprep.subr.mxu0 0.0
    %1149 = vmatpush1.msra.mxu0 0.0
    %1150 = vmatprep.subr.mxu0 0.0
    %1151 = vmatpush1.msra.mxu0 0.0
    %1152 = vmatprep.subr.mxu0 0.0
    %1153 = vmatpush1.msra.mxu0 0.0
    %1154 = vmatprep.subr.mxu0 0.0
    %1155 = vmatpush1.msra.mxu0 0.0
    %1156 = vmatprep.subr.mxu0 0.0
    %1157 = vmatpush1.msra.mxu0 0.0
    %1158 = vmatprep.subr.mxu0 0.0
    %1159 = vmatpush1.msra.mxu0 0.0
    %1160 = vmatprep.subr.mxu0 0.0
    %1161 = vmatpush1.msra.mxu0 0.0
    %1162 = vmatprep.subr.mxu0 0.0
    %1163 = vmatpush1.msra.mxu0 0.0
    %1164 = vmatprep.subr.mxu0 0.0
    %1165 = vmatpush1.msra.mxu0 0.0
    %1166 = vmatprep.subr.mxu0 0.0
    %1167 = vmatpush1.msra.mxu0 0.0
    %1168 = vmatprep.subr.mxu0 0.0
    %1169 = vmatpush1.msra.mxu0 0.0
    %1170 = vmatprep.subr.mxu0 0.0
    %1171 = vmatpush1.msra.mxu0 0.0
    %1172 = vmatprep.mubr.f32.mxu0 0.0
    %1173 = vmatmul.mubr.f32.gmra.mrb[0].mxu0 %v893
    %v1174 = vpop.f32.mrb[0].mxu0
    %v1175 = vadd.f32 %v889, %v1174
    %v1176 = vpop.f32.mrb[0].mxu0
    %v1177 = vadd.f32 %v889, %v1176
    %1178 = vdwg.mxu0
    %1179 = vmatprep.subr.mxu0 %v829
    %1180 = vmatpush1.msra.mxu0 %v828
    %1181 = vmatprep.subr.mxu0 %v845
    %1182 = vmatpush1.msra.mxu0 %v844
    %1183 = vmatprep.subr.mxu0 %v861
    %1184 = vmatpush1.msra.mxu0 %v860
    %1185 = vmatprep.subr.mxu0 %v877
    %1186 = vmatpush1.msra.mxu0 %v876
    %1187 = vmatprep.subr.mxu0 0.0
    %1188 = vmatpush1.msra.mxu0 0.0
    %1189 = vmatprep.subr.mxu0 0.0
    %1190 = vmatpush1.msra.mxu0 0.0
    %1191 = vmatprep.subr.mxu0 0.0
    %1192 = vmatpush1.msra.mxu0 0.0
    %1193 = vmatprep.subr.mxu0 0.0
    %1194 = vmatpush1.msra.mxu0 0.0
    %1195 = vmatprep.subr.mxu0 0.0
    %1196 = vmatpush1.msra.mxu0 0.0
    %1197 = vmatprep.subr.mxu0 0.0
    %1198 = vmatpush1.msra.mxu0 0.0
    %1199 = vmatprep.subr.mxu0 0.0
    %1200 = vmatpush1.msra.mxu0 0.0
    %1201 = vmatprep.subr.mxu0 0.0
    %1202 = vmatpush1.msra.mxu0 0.0
    %1203 = vmatprep.subr.mxu0 0.0
    %1204 = vmatpush1.msra.mxu0 0.0
    %1205 = vmatprep.subr.mxu0 0.0
    %1206 = vmatpush1.msra.mxu0 0.0
    %1207 = vmatprep.subr.mxu0 0.0
    %1208 = vmatpush1.msra.mxu0 0.0
    %1209 = vmatprep.subr.mxu0 0.0
    %1210 = vmatpush1.msra.mxu0 0.0
    %1211 = vmatprep.subr.mxu0 0.0
    %1212 = vmatpush1.msra.mxu0 0.0
    %1213 = vmatprep.subr.mxu0 0.0
    %1214 = vmatpush1.msra.mxu0 0.0
    %1215 = vmatprep.subr.mxu0 0.0
    %1216 = vmatpush1.msra.mxu0 0.0
    %1217 = vmatprep.subr.mxu0 0.0
    %1218 = vmatpush1.msra.mxu0 0.0
    %1219 = vmatprep.subr.mxu0 0.0
    %1220 = vmatpush1.msra.mxu0 0.0
    %1221 = vmatprep.subr.mxu0 0.0
    %1222 = vmatpush1.msra.mxu0 0.0
    %1223 = vmatprep.subr.mxu0 0.0
    %1224 = vmatpush1.msra.mxu0 0.0
    %1225 = vmatprep.subr.mxu0 0.0
    %1226 = vmatpush1.msra.mxu0 0.0
    %1227 = vmatprep.subr.mxu0 0.0
    %1228 = vmatpush1.msra.mxu0 0.0
    %1229 = vmatprep.subr.mxu0 0.0
    %1230 = vmatpush1.msra.mxu0 0.0
    %1231 = vmatprep.subr.mxu0 0.0
    %1232 = vmatpush1.msra.mxu0 0.0
    %1233 = vmatprep.subr.mxu0 0.0
    %1234 = vmatpush1.msra.mxu0 0.0
    %1235 = vmatprep.subr.mxu0 0.0
    %1236 = vmatpush1.msra.mxu0 0.0
    %1237 = vmatprep.subr.mxu0 0.0
    %1238 = vmatpush1.msra.mxu0 0.0
    %1239 = vmatprep.subr.mxu0 0.0
    %1240 = vmatpush1.msra.mxu0 0.0
    %1241 = vmatprep.subr.mxu0 0.0
    %1242 = vmatpush1.msra.mxu0 0.0
    %1243 = vmatprep.mubr.f32.mxu0 0.0
    %1244 = vmatmul.mubr.f32.gmra.mrb[0].mxu0 %v893
    %v1245 = vpop.f32.mrb[0].mxu0
    %v1246 = vadd.f32 %v889, %v1245
    %v1247 = vpop.f32.mrb[0].mxu0
    %v1248 = vadd.f32 %v889, %v1247
    %1249 = vdwg.mxu0
    %1250 = vmatprep.subr.mxu0 %v831
    %1251 = vmatpush1.msra.mxu0 %v830
    %1252 = vmatprep.subr.mxu0 %v847
    %1253 = vmatpush1.msra.mxu0 %v846
    %1254 = vmatprep.subr.mxu0 %v863
    %1255 = vmatpush1.msra.mxu0 %v862
    %1256 = vmatprep.subr.mxu0 %v879
    %1257 = vmatpush1.msra.mxu0 %v878
    %1258 = vmatprep.subr.mxu0 0.0
    %1259 = vmatpush1.msra.mxu0 0.0
    %1260 = vmatprep.subr.mxu0 0.0
    %1261 = vmatpush1.msra.mxu0 0.0
    %1262 = vmatprep.subr.mxu0 0.0
    %1263 = vmatpush1.msra.mxu0 0.0
    %1264 = vmatprep.subr.mxu0 0.0
    %1265 = vmatpush1.msra.mxu0 0.0
    %1266 = vmatprep.subr.mxu0 0.0
    %1267 = vmatpush1.msra.mxu0 0.0
    %1268 = vmatprep.subr.mxu0 0.0
    %1269 = vmatpush1.msra.mxu0 0.0
    %1270 = vmatprep.subr.mxu0 0.0
    %1271 = vmatpush1.msra.mxu0 0.0
    %1272 = vmatprep.subr.mxu0 0.0
    %1273 = vmatpush1.msra.mxu0 0.0
    %1274 = vmatprep.subr.mxu0 0.0
    %1275 = vmatpush1.msra.mxu0 0.0
    %1276 = vmatprep.subr.mxu0 0.0
    %1277 = vmatpush1.msra.mxu0 0.0
    %1278 = vmatprep.subr.mxu0 0.0
    %1279 = vmatpush1.msra.mxu0 0.0
    %1280 = vmatprep.subr.mxu0 0.0
    %1281 = vmatpush1.msra.mxu0 0.0
    %1282 = vmatprep.subr.mxu0 0.0
    %1283 = vmatpush1.msra.mxu0 0.0
    %1284 = vmatprep.subr.mxu0 0.0
    %1285 = vmatpush1.msra.mxu0 0.0
    %1286 = vmatprep.subr.mxu0 0.0
    %1287 = vmatpush1.msra.mxu0 0.0
    %1288 = vmatprep.subr.mxu0 0.0
    %1289 = vmatpush1.msra.mxu0 0.0
    %1290 = vmatprep.subr.mxu0 0.0
    %1291 = vmatpush1.msra.mxu0 0.0
    %1292 = vmatprep.subr.mxu0 0.0
    %1293 = vmatpush1.msra.mxu0 0.0
    %1294 = vmatprep.subr.mxu0 0.0
    %1295 = vmatpush1.msra.mxu0 0.0
    %1296 = vmatprep.subr.mxu0 0.0
    %1297 = vmatpush1.msra.mxu0 0.0
    %1298 = vmatprep.subr.mxu0 0.0
    %1299 = vmatpush1.msra.mxu0 0.0
    %1300 = vmatprep.subr.mxu0 0.0
    %1301 = vmatpush1.msra.mxu0 0.0
    %1302 = vmatprep.subr.mxu0 0.0
    %1303 = vmatpush1.msra.mxu0 0.0
    %1304 = vmatprep.subr.mxu0 0.0
    %1305 = vmatpush1.msra.mxu0 0.0
    %1306 = vmatprep.subr.mxu0 0.0
    %1307 = vmatpush1.msra.mxu0 0.0
    %1308 = vmatprep.subr.mxu0 0.0
    %1309 = vmatpush1.msra.mxu0 0.0
    %1310 = vmatprep.subr.mxu0 0.0
    %1311 = vmatpush1.msra.mxu0 0.0
    %1312 = vmatprep.subr.mxu0 0.0
    %1313 = vmatpush1.msra.mxu0 0.0
    %1314 = vmatprep.mubr.f32.mxu0 0.0
    %1315 = vmatmul.mubr.f32.gmra.mrb[0].mxu0 %v893
    %v1316 = vpop.f32.mrb[0].mxu0
    %v1317 = vadd.f32 %v889, %v1316
    %v1318 = vpop.f32.mrb[0].mxu0
    %v1319 = vadd.f32 %v889, %v1318
    %1320 = vdwg.mxu0
    %1321 = vmatprep.subr.mxu0 %v833
    %1322 = vmatpush1.msra.mxu0 %v832
    %1323 = vmatprep.subr.mxu0 %v849
    %1324 = vmatpush1.msra.mxu0 %v848
    %1325 = vmatprep.subr.mxu0 %v865
    %1326 = vmatpush1.msra.mxu0 %v864
    %1327 = vmatprep.subr.mxu0 %v881
    %1328 = vmatpush1.msra.mxu0 %v880
    %1329 = vmatprep.subr.mxu0 0.0
    %1330 = vmatpush1.msra.mxu0 0.0
    %1331 = vmatprep.subr.mxu0 0.0
    %1332 = vmatpush1.msra.mxu0 0.0
    %1333 = vmatprep.subr.mxu0 0.0
    %1334 = vmatpush1.msra.mxu0 0.0
    %1335 = vmatprep.subr.mxu0 0.0
    %1336 = vmatpush1.msra.mxu0 0.0
    %1337 = vmatprep.subr.mxu0 0.0
    %1338 = vmatpush1.msra.mxu0 0.0
    %1339 = vmatprep.subr.mxu0 0.0
    %1340 = vmatpush1.msra.mxu0 0.0
    %1341 = vmatprep.subr.mxu0 0.0
    %1342 = vmatpush1.msra.mxu0 0.0
    %1343 = vmatprep.subr.mxu0 0.0
    %1344 = vmatpush1.msra.mxu0 0.0
    %1345 = vmatprep.subr.mxu0 0.0
    %1346 = vmatpush1.msra.mxu0 0.0
    %1347 = vmatprep.subr.mxu0 0.0
    %1348 = vmatpush1.msra.mxu0 0.0
    %1349 = vmatprep.subr.mxu0 0.0
    %1350 = vmatpush1.msra.mxu0 0.0
    %1351 = vmatprep.subr.mxu0 0.0
    %1352 = vmatpush1.msra.mxu0 0.0
    %1353 = vmatprep.subr.mxu0 0.0
    %1354 = vmatpush1.msra.mxu0 0.0
    %1355 = vmatprep.subr.mxu0 0.0
    %1356 = vmatpush1.msra.mxu0 0.0
    %1357 = vmatprep.subr.mxu0 0.0
    %1358 = vmatpush1.msra.mxu0 0.0
    %1359 = vmatprep.subr.mxu0 0.0
    %1360 = vmatpush1.msra.mxu0 0.0
    %1361 = vmatprep.subr.mxu0 0.0
    %1362 = vmatpush1.msra.mxu0 0.0
    %1363 = vmatprep.subr.mxu0 0.0
    %1364 = vmatpush1.msra.mxu0 0.0
    %1365 = vmatprep.subr.mxu0 0.0
    %1366 = vmatpush1.msra.mxu0 0.0
    %1367 = vmatprep.subr.mxu0 0.0
    %1368 = vmatpush1.msra.mxu0 0.0
    %1369 = vmatprep.subr.mxu0 0.0
    %1370 = vmatpush1.msra.mxu0 0.0
    %1371 = vmatprep.subr.mxu0 0.0
    %1372 = vmatpush1.msra.mxu0 0.0
    %1373 = vmatprep.subr.mxu0 0.0
    %1374 = vmatpush1.msra.mxu0 0.0
    %1375 = vmatprep.subr.mxu0 0.0
    %1376 = vmatpush1.msra.mxu0 0.0
    %1377 = vmatprep.subr.mxu0 0.0
    %1378 = vmatpush1.msra.mxu0 0.0
    %1379 = vmatprep.subr.mxu0 0.0
    %1380 = vmatpush1.msra.mxu0 0.0
    %1381 = vmatprep.subr.mxu0 0.0
    %1382 = vmatpush1.msra.mxu0 0.0
    %1383 = vmatprep.subr.mxu0 0.0
    %1384 = vmatpush1.msra.mxu0 0.0
    %1385 = vmatprep.mubr.f32.mxu0 0.0
    %1386 = vmatmul.mubr.f32.gmra.mrb[0].mxu0 %v893
    %v1387 = vpop.f32.mrb[0].mxu0
    %v1388 = vadd.f32 %v889, %v1387
    %v1389 = vpop.f32.mrb[0].mxu0
    %v1390 = vadd.f32 %v889, %v1389
    %1391 = vdwg.mxu0
    %1392 = vmatprep.subr.mxu0 %v835
    %1393 = vmatpush1.msra.mxu0 %v834
    %1394 = vmatprep.subr.mxu0 %v851
    %1395 = vmatpush1.msra.mxu0 %v850
    %1396 = vmatprep.subr.mxu0 %v867
    %1397 = vmatpush1.msra.mxu0 %v866
    %1398 = vmatprep.subr.mxu0 %v883
    %1399 = vmatpush1.msra.mxu0 %v882
    %1400 = vmatprep.subr.mxu0 0.0
    %1401 = vmatpush1.msra.mxu0 0.0
    %1402 = vmatprep.subr.mxu0 0.0
    %1403 = vmatpush1.msra.mxu0 0.0
    %1404 = vmatprep.subr.mxu0 0.0
    %1405 = vmatpush1.msra.mxu0 0.0
    %1406 = vmatprep.subr.mxu0 0.0
    %1407 = vmatpush1.msra.mxu0 0.0
    %1408 = vmatprep.subr.mxu0 0.0
    %1409 = vmatpush1.msra.mxu0 0.0
    %1410 = vmatprep.subr.mxu0 0.0
    %1411 = vmatpush1.msra.mxu0 0.0
    %1412 = vmatprep.subr.mxu0 0.0
    %1413 = vmatpush1.msra.mxu0 0.0
    %1414 = vmatprep.subr.mxu0 0.0
    %1415 = vmatpush1.msra.mxu0 0.0
    %1416 = vmatprep.subr.mxu0 0.0
    %1417 = vmatpush1.msra.mxu0 0.0
    %1418 = vmatprep.subr.mxu0 0.0
    %1419 = vmatpush1.msra.mxu0 0.0
    %1420 = vmatprep.subr.mxu0 0.0
    %1421 = vmatpush1.msra.mxu0 0.0
    %1422 = vmatprep.subr.mxu0 0.0
    %1423 = vmatpush1.msra.mxu0 0.0
    %1424 = vmatprep.subr.mxu0 0.0
    %1425 = vmatpush1.msra.mxu0 0.0
    %1426 = vmatprep.subr.mxu0 0.0
    %1427 = vmatpush1.msra.mxu0 0.0
    %1428 = vmatprep.subr.mxu0 0.0
    %1429 = vmatpush1.msra.mxu0 0.0
    %1430 = vmatprep.subr.mxu0 0.0
    %1431 = vmatpush1.msra.mxu0 0.0
    %1432 = vmatprep.subr.mxu0 0.0
    %1433 = vmatpush1.msra.mxu0 0.0
    %1434 = vmatprep.subr.mxu0 0.0
    %1435 = vmatpush1.msra.mxu0 0.0
    %1436 = vmatprep.subr.mxu0 0.0
    %1437 = vmatpush1.msra.mxu0 0.0
    %1438 = vmatprep.subr.mxu0 0.0
    %1439 = vmatpush1.msra.mxu0 0.0
    %1440 = vmatprep.subr.mxu0 0.0
    %1441 = vmatpush1.msra.mxu0 0.0
    %1442 = vmatprep.subr.mxu0 0.0
    %1443 = vmatpush1.msra.mxu0 0.0
    %1444 = vmatprep.subr.mxu0 0.0
    %1445 = vmatpush1.msra.mxu0 0.0
    %1446 = vmatprep.subr.mxu0 0.0
    %1447 = vmatpush1.msra.mxu0 0.0
    %1448 = vmatprep.subr.mxu0 0.0
    %1449 = vmatpush1.msra.mxu0 0.0
    %1450 = vmatprep.subr.mxu0 0.0
    %1451 = vmatpush1.msra.mxu0 0.0
    %1452 = vmatprep.subr.mxu0 0.0
    %1453 = vmatpush1.msra.mxu0 0.0
    %1454 = vmatprep.subr.mxu0 0.0
    %1455 = vmatpush1.msra.mxu0 0.0
    %1456 = vmatprep.mubr.f32.mxu0 0.0
    %1457 = vmatmul.mubr.f32.gmra.mrb[0].mxu0 %v893
    %v1458 = vpop.f32.mrb[0].mxu0
    %v1459 = vadd.f32 %v889, %v1458
    %v1460 = vpop.f32.mrb[0].mxu0
    %v1461 = vadd.f32 %v889, %v1460
    %1462 = vdwg.mxu0
    %1463 = vst [vmem:[#allocation5] sm:$0xff] %v962
    %1464 = vst [vmem:[#allocation5 + $0x8] sm:$0xff] %v964
    %1465 = vst [vmem:[#allocation5 + $0x10] sm:$0xff] %v1033
    %1466 = vst [vmem:[#allocation5 + $0x18] sm:$0xff] %v1035
    %1467 = vst [vmem:[#allocation5 + $0x20] sm:$0xff] %v1104
    %1468 = vst [vmem:[#allocation5 + $0x28] sm:$0xff] %v1106
    %1469 = vst [vmem:[#allocation5 + $0x30] sm:$0xff] %v1175
    %1470 = vst [vmem:[#allocation5 + $0x38] sm:$0xff] %v1177
    %1471 = vst [vmem:[#allocation5 + $0x40] sm:$0xff] %v1246
    %1472 = vst [vmem:[#allocation5 + $0x48] sm:$0xff] %v1248
    %1473 = vst [vmem:[#allocation5 + $0x50] sm:$0xff] %v1317
    %1474 = vst [vmem:[#allocation5 + $0x58] sm:$0xff] %v1319
    %1475 = vst [vmem:[#allocation5 + $0x60] sm:$0xff] %v1388
    %1476 = vst [vmem:[#allocation5 + $0x68] sm:$0xff] %v1390
    %1477 = vst [vmem:[#allocation5 + $0x70] sm:$0xff] %v1459
    %1478 = vst [vmem:[#allocation5 + $0x78] sm:$0xff] %v1461
    // Predicated region
    $region26: #{_mu_forward.1} parent=1 // pred_check
      _
    $region27: #{_mu_forward.1} parent=1 // pred_check_branch
      %1480 = sbr.rel (0) target = $region29
    $region28: #{_mu_forward.1} parent=1 // pred_region
      %s1482 = ssub.s32 2048, 2048
      %1483 = vsyncadd [#allocation4], %s1482
      %s1485 = sshll.u32 [#allocation5], 4
      %s1486 = int_to_ptr.vmem [resolvable:$true] %s1485
      %1488 = dma.vmem_to_hbm [thread:$0]  %s1486, 2048, %s5, [#allocation4]
    $region29: #{_mu_forward.1} parent=1 // pred_fallthru
      _
    // Predicated region
    $region30: #{_mu_forward.1} parent=1 // pred_check
      _
    $region31: #{_mu_forward.1} parent=1 // pred_check_branch
      %1490 = sbr.rel (0) target = $region33
    $region32: #{_mu_forward.1} parent=1 // pred_region
      %1491 = dma.done [#allocation4], 2048
    $region33: #{_mu_forward.1} parent=1 // pred_fallthru
      _
    %1492 = vsyncpa [#allocation3], 1
    %1493 = vsyncpa [#allocation4], 1

</llo_original>
